<compile_context>
chip_gen: v7x
topology: tpu7x:2x2x1
jax: 0.10.0
libtpu: 0.0.40
codegen_flags: <defaults>
</compile_context>

<pallas_src>
import functools

import jax
import jax.numpy as jnp
from jax.experimental import pallas as pl
from jax.experimental.pallas import tpu as pltpu


_VMEM_LIMIT_BYTES = 32 * 1024 * 1024  # explicit scoped-VMEM cap, safe on v5e/v6e/v7x


def _round_up(x, m):
    return ((x + m - 1) // m) * m


def _pick_tm(M):
    """Row tile: big to amortize per-step overhead, but >=2 grid steps when possible."""
    TM = 512
    if M < 2 * TM:
        TM = max(8, _round_up(pl.cdiv(M, 2), 8))
    return TM


# ----------------------------- Pallas kernels ------------------------------

def _branch_mm_kernel(u_ref, x_ref, c_ref, m_ref,
                      w1_ref, w2_ref, w3_ref, w4_ref, b_ref, o_ref):
    """xcat = SiLU(u@W1 + x@W2 + c@W3 + m@W4 + b).

    The four branch convs write disjoint (lane-padded) column ranges of the output,
    so summing the four products is exactly the channel concat -- with no HBM-side
    input concat and a full lane-dense (128-multiple) output store.
    """
    y = jnp.dot(u_ref[...], w1_ref[...], preferred_element_type=jnp.float32)
    y = y + jnp.dot(x_ref[...], w2_ref[...], preferred_element_type=jnp.float32)
    y = y + jnp.dot(c_ref[...], w3_ref[...], preferred_element_type=jnp.float32)
    y = y + jnp.dot(m_ref[...], w4_ref[...], preferred_element_type=jnp.float32)
    y = y + b_ref[...]
    y = y * pl.reciprocal(1.0 + jnp.exp(-y), approx=True)   # SiLU, recip on EUP
    o_ref[...] = y.astype(o_ref.dtype)


def _pw_mm_res_kernel(x_ref, w_ref, b_ref, r_ref, o_ref):
    """o = r + SiLU(x @ w + b); r and o are HBM-aliased (in-place epilogue)."""
    y = jnp.dot(x_ref[...], w_ref[...], preferred_element_type=jnp.float32)
    y = y + b_ref[...]
    y = y * pl.reciprocal(1.0 + jnp.exp(-y), approx=True)
    o_ref[...] = (r_ref[...].astype(jnp.float32) + y).astype(o_ref.dtype)


def _make_dw_kernel(K, H, W, C, P, CB, Wp):
    """feature = merged KxK depthwise conv of x (identity folded into the center tap)."""

    def kernel(x_ref, w_ref, b_ref, o_ref, pad_ref):
        x = x_ref[0]                                           # (H, W, C) f32

        # Zero ONLY the halo strips -- the center region is fully overwritten each
        # grid step, so no full-scratch memset (which would be a whole extra vst pass).
        if P > 0:
            pad_ref[0:P, :, :] = jnp.zeros((P, Wp, C), jnp.float32)
            pad_ref[P + H:P + H + P, :, :] = jnp.zeros((P, Wp, C), jnp.float32)
        if CB > 0:
            pad_ref[P:P + H, 0:CB, :] = jnp.zeros((H, CB, C), jnp.float32)
        if Wp - CB - W > 0:
            pad_ref[P:P + H, CB + W:Wp, :] = jnp.zeros((H, Wp - CB - W, C), jnp.float32)
        pad_ref[P:P + H, CB:CB + W, :] = x                     # sublane-aligned center

        wv = w_ref[...]                                        # (K*K, C) f32
        full = pad_ref[...]                                    # (Hp, Wp, C)
        acc = jnp.zeros((H, W, C), jnp.float32)
        for dx in range(K):
            shift = (P - dx) % Wp
            # Express the dx shift as a sublane rotation (XLU slot) so every window
            # slice below starts at the 8-aligned column CB (no per-tap realign).
            shifted = pltpu.roll(full, shift=shift, axis=1) if shift else full
            for dy in range(K):
                win = shifted[dy:dy + H, CB:CB + W, :]
                acc = acc + win * wv[dy * K + dx, :]
        acc = acc + b_ref[...]                                 # pre-summed biases, once
        o_ref[0] = acc.astype(o_ref.dtype)

    return kernel


# ------------------------------ Pallas wrappers -----------------------------

def branch_matmul(u1, x2c, col, mp, w1, w2, w3, w4, b):
    """(M, Cin_i) x 4 -> SiLU(sum_i x_i @ W_i + b), lane-dense Cout, f32 output."""
    M = u1.shape[0]
    Cout = w1.shape[1]
    TM = _pick_tm(M)
    row = lambda i: (i, 0)
    rep = lambda i: (0, 0)
    bf = jnp.bfloat16
    return pl.pallas_call(
        _branch_mm_kernel,
        out_shape=jax.ShapeDtypeStruct((M, Cout), jnp.float32),
        grid=(pl.cdiv(M, TM),),
        in_specs=[pl.BlockSpec((TM, u1.shape[1]), row),
                  pl.BlockSpec((TM, x2c.shape[1]), row),
                  pl.BlockSpec((TM, col.shape[1]), row),
                  pl.BlockSpec((TM, mp.shape[1]), row),
                  pl.BlockSpec(w1.shape, rep),
                  pl.BlockSpec(w2.shape, rep),
                  pl.BlockSpec(w3.shape, rep),
                  pl.BlockSpec(w4.shape, rep),
                  pl.BlockSpec((1, Cout), rep)],
        out_specs=pl.BlockSpec((TM, Cout), row),
        compiler_params=pltpu.CompilerParams(
            dimension_semantics=("parallel",),
            vmem_limit_bytes=_VMEM_LIMIT_BYTES),
    )(u1, x2c, col, mp,
      w1.astype(bf), w2.astype(bf), w3.astype(bf), w4.astype(bf),
      b.astype(jnp.float32).reshape(1, Cout))


def pw_matmul_silu_residual(x2d, w, b, residual):
    """out = residual + SiLU(x2d @ w + b), written in place over `residual`."""
    M, Cin = x2d.shape
    Cout = w.shape[1]
    TM = _pick_tm(M)
    row = lambda i: (i, 0)
    rep = lambda i: (0, 0)
    return pl.pallas_call(
        _pw_mm_res_kernel,
        out_shape=jax.ShapeDtypeStruct((M, Cout), jnp.float32),
        grid=(pl.cdiv(M, TM),),
        in_specs=[pl.BlockSpec((TM, Cin), row),
                  pl.BlockSpec((Cin, Cout), rep),
                  pl.BlockSpec((1, Cout), rep),
                  pl.BlockSpec((TM, Cout), row)],
        out_specs=pl.BlockSpec((TM, Cout), row),
        input_output_aliases={3: 0},          # write the result over the residual buffer
        compiler_params=pltpu.CompilerParams(
            dimension_semantics=("parallel",),
            vmem_limit_bytes=_VMEM_LIMIT_BYTES),
    )(x2d, w.astype(jnp.bfloat16), b.astype(jnp.float32).reshape(1, Cout), residual)


def dw_multiscale_sum(x_nhwc, dw_w, dw_b, K):
    """feature = x + sum_k dwconv_k(x), as a single merged KxK depthwise conv."""
    B, H, W, C = x_nhwc.shape
    P = K // 2
    CB = _round_up(max(P, 1), 8)            # sublane-aligned column base (>= P)
    Hp = H + 2 * P
    Wp = _round_up(CB + W + P, 8)           # 8-aligned sublane extent of scratch

    # TODO(synk): for production H/W, also tile over rows (grid=(B, H//TH)) with an
    # in-VMEM row halo so v7x (64 MiB VMEM, 2 TCs) gets >=2 pipelined steps per core.
    return pl.pallas_call(
        _make_dw_kernel(K, H, W, C, P, CB, Wp),
        out_shape=jax.ShapeDtypeStruct((B, H, W, C), jnp.bfloat16),  # bf16: pw casts anyway
        grid=(B,),
        in_specs=[pl.BlockSpec((1, H, W, C), lambda b: (b, 0, 0, 0)),
                  pl.BlockSpec((K * K, C), lambda b: (0, 0)),
                  pl.BlockSpec((1, C), lambda b: (0, 0))],
        out_specs=pl.BlockSpec((1, H, W, C), lambda b: (b, 0, 0, 0)),
        scratch_shapes=[pltpu.VMEM((Hp, Wp, C), jnp.float32)],
        compiler_params=pltpu.CompilerParams(
            dimension_semantics=("parallel",),
            vmem_limit_bytes=_VMEM_LIMIT_BYTES),
    )(x_nhwc, dw_w, dw_b.reshape(1, C))


# ------------------------------- JAX glue ----------------------------------

def _nchw_to_nhwc(x):
    return jnp.transpose(x, (0, 2, 3, 1))


def _nhwc_to_nchw(x):
    return jnp.transpose(x, (0, 3, 1, 2))


def _upsample_nearest_2x(x):  # NHWC
    return jnp.repeat(jnp.repeat(x, 2, axis=1), 2, axis=2)


def _avg_pool_2x2_s1(x):  # NHWC, kernel 2, stride 1, no padding
    return 0.25 * (x[:, :-1, :-1, :] + x[:, 1:, :-1, :] +
                   x[:, :-1, 1:, :] + x[:, 1:, 1:, :])


def _max_pool_3x3_s2_p1(x):  # NHWC
    B, H, W, C = x.shape
    Ho = (H + 2 - 3) // 2 + 1
    Wo = (W + 2 - 3) // 2 + 1
    xp = jnp.pad(x, ((0, 0), (1, 1), (1, 1), (0, 0)), constant_values=-jnp.inf)
    out = None
    for dy in range(3):
        for dx in range(3):
            win = xp[:, dy:dy + 2 * Ho - 1:2, dx:dx + 2 * Wo - 1:2, :]
            out = win if out is None else jnp.maximum(out, win)
    return out


def _im2col_3x3_s2_p1(x):  # NHWC -> (B, Ho, Wo, 9*C); feature order (dy, dx, c)
    B, H, W, C = x.shape
    Ho = (H + 2 - 3) // 2 + 1
    Wo = (W + 2 - 3) // 2 + 1
    xp = jnp.pad(x, ((0, 0), (1, 1), (1, 1), (0, 0)))
    cols = []
    for dy in range(3):
        for dx in range(3):
            cols.append(xp[:, dy:dy + 2 * Ho - 1:2, dx:dx + 2 * Wo - 1:2, :])
    return jnp.concatenate(cols, axis=-1)


# ------------------------------- parameters --------------------------------

def init_mcam_params(key, inc, kernel_sizes, e=0.5):
    hidc = int(inc[1] * e)
    c3 = hidc * 3
    c3p = _round_up(max(c3, 128), 128)      # lane-dense channel axis, end-to-end
    adc = hidc // 2                         # ADown cv1/cv2 output channels
    eps = 1e-3                              # BatchNorm eps; BN folded into conv weights

    keys = iter(jax.random.split(key, 4 + 2 * len(kernel_sizes) + 2))

    def rnd(shape, fan_in):
        return jax.random.normal(next(keys), shape, jnp.float32) / jnp.sqrt(float(fan_in))

    def conv_bn(cin_flat, cout, col_off):
        """Conv+BN folded, placed at its column offset inside the lane-padded width."""
        w = rnd((cin_flat, cout), cin_flat)
        gamma = jnp.ones((cout,), jnp.float32)
        beta = jnp.zeros((cout,), jnp.float32)
        mean = jnp.zeros((cout,), jnp.float32)
        var = jnp.ones((cout,), jnp.float32)
        scale = gamma / jnp.sqrt(var + eps)
        wf = w * scale[None, :]
        bf = beta - mean * scale
        wp = jnp.zeros((cin_flat, c3p), jnp.float32).at[:, col_off:col_off + cout].set(wf)
        bp = jnp.zeros((c3p,), jnp.float32).at[col_off:col_off + cout].set(bf)
        return wp, bp

    # Four branch convs; disjoint column ranges implement the channel concat.
    w1, b1 = conv_bn(inc[0], hidc, 0)                       # conv1 (1x1 after upsample)
    w2, b2 = conv_bn(inc[1], hidc, hidc)                    # conv2 (1x1)
    w3, b3 = conv_bn(9 * (inc[2] // 2), adc, 2 * hidc)      # ADown cv1 (3x3 s2 p1, im2col)
    w4, b4 = conv_bn(inc[2] // 2, adc, 2 * hidc + adc)      # ADown cv2 (1x1)
    branch_b = b1 + b2 + b3 + b4

    # Multi-scale depthwise convs merged into ONE kmax x kmax weight; the identity
    # term (feature = x + sum_k conv_k(x)) is absorbed into the center tap (+1.0)
    # and the per-kernel biases are pre-summed.
    kmax = max(kernel_sizes)
    pmax = kmax // 2
    dw_w = jnp.zeros((kmax * kmax, c3p), jnp.float32)
    dw_b = jnp.zeros((c3p,), jnp.float32)
    for k in kernel_sizes:
        wk = rnd((k * k, c3), k * k)
        bk = jax.random.normal(next(keys), (c3,), jnp.float32) * 0.05
        off = pmax - k // 2
        for dy in range(k):
            for dx in range(k):
                row = (dy + off) * kmax + (dx + off)
                dw_w = dw_w.at[row, :c3].add(wk[dy * k + dx])
        dw_b = dw_b.at[:c3].add(bk)
    dw_w = dw_w.at[pmax * kmax + pmax, :].add(1.0)          # identity term

    # Pointwise Conv+BN+SiLU, lane-padded on both axes (padded rows/cols are zero).
    pw_core = rnd((c3, c3), c3) * (1.0 / jnp.sqrt(1.0 + eps))
    pw_w = jnp.zeros((c3p, c3p), jnp.float32).at[:c3, :c3].set(pw_core)
    pw_b = jnp.zeros((c3p,), jnp.float32)

    return {"w1": w1, "w2": w2, "w3": w3, "w4": w4, "branch_b": branch_b,
            "dw_w": dw_w, "dw_b": dw_b, "pw_w": pw_w, "pw_b": pw_b}


# -------------------------------- forward ----------------------------------

def mcam_forward(params, x1, x2, x3, kernel_sizes, out_channels):
    """x1,x2,x3 are NCHW float32 tensors (PyTorch convention); returns NCHW."""
    bf = jnp.bfloat16
    x1 = _nchw_to_nhwc(x1.astype(jnp.float32))
    x2 = _nchw_to_nhwc(x2.astype(jnp.float32))
    x3 = _nchw_to_nhwc(x3.astype(jnp.float32))

    # conv1 branch input: nearest 2x upsample of x1.
    # TODO(synk): fold the nearest upsample into the matmul index_map (2x2 groups of
    # output rows re-read the same x1 tile) instead of materializing u1 in HBM.
    u1 = _upsample_nearest_2x(x1)
    B, H, W, _ = u1.shape
    M = B * H * W

    # conv3 branch (ADown): avgpool -> channel split -> [3x3 s2 (im2col) | maxpool 3x3 s2]
    a = _avg_pool_2x2_s1(x3)
    ch = a.shape[-1] // 2
    a1, a2 = a[..., :ch], a[..., ch:]
    # TODO(synk): im2col still materializes 9x the cv1 input in HBM; fold into a 9-tap
    # in-kernel accumulation to cut that traffic (largest relative win on v5e).
    col = _im2col_3x3_s2_p1(a1)
    mp = _max_pool_3x3_s2_p1(a2)

    # Fused branch matmul: xcat = SiLU(u1@W1 + x2@W2 + col@W3 + mp@W4 + b), lane-dense.
    xcat = branch_matmul(
        u1.astype(bf).reshape(M, -1), x2.astype(bf).reshape(M, -1),
        col.astype(bf).reshape(M, -1), mp.astype(bf).reshape(M, -1),
        params["w1"], params["w2"], params["w3"], params["w4"], params["branch_b"])

    Cp = xcat.shape[-1]                     # lane-padded channel count (>= 3*hidc)
    x_nhwc = xcat.reshape(B, H, W, Cp)

    # feature = x + sum_k dwconv_k(x)  (single merged depthwise kernel, halo in VMEM)
    s = dw_multiscale_sum(x_nhwc, params["dw_w"], params["dw_b"], max(kernel_sizes))

    # out = x + pw_conv(feature)       (matmul + SiLU + residual, in place over xcat)
    out2d = pw_matmul_silu_residual(s.reshape(M, Cp), params["pw_w"], params["pw_b"],
                                    residual=xcat)
    out = out2d.reshape(B, H, W, Cp)[..., :out_channels]
    return _nhwc_to_nchw(out)


# ---------------------------------- main ------------------------------------

if __name__ == "__main__":
    inc = (8, 16, 32)          # channels of x1, x2, x3
    kernel_sizes = (3, 5)
    e = 0.5
    hidc = int(inc[1] * e)

    key = jax.random.PRNGKey(0)
    kx1, kx2, kx3, kp = jax.random.split(key, 4)
    # spatial conventions implied by the forward: x1 at H/2, x2 at H, x3 at 2H
    x1 = jax.random.normal(kx1, (2, inc[0], 4, 4), jnp.float32)
    x2 = jax.random.normal(kx2, (2, inc[1], 8, 8), jnp.float32)
    x3 = jax.random.normal(kx3, (2, inc[2], 16, 16), jnp.float32)

    params = init_mcam_params(kp, inc, kernel_sizes, e)

    fwd = jax.jit(functools.partial(mcam_forward, kernel_sizes=kernel_sizes,
                                    out_channels=3 * hidc))
    out = fwd(params, x1, x2, x3)
    out = jax.block_until_ready(out)

    assert out.shape == (2, 3 * hidc, 8, 8), out.shape
    assert out.dtype == jnp.float32
    print("KERNEL_OK")
</pallas_src>

<mosaic_0001>
module attributes {stable_mosaic.version = 11 : i64} {
  func.func @_branch_mm_kernel(%arg0: i32, %arg1: memref<64x8xbf16, #tpu.memory_space<vmem>>, %arg2: memref<64x16xbf16, #tpu.memory_space<vmem>>, %arg3: memref<64x144xbf16, #tpu.memory_space<vmem>>, %arg4: memref<64x16xbf16, #tpu.memory_space<vmem>>, %arg5: memref<8x128xbf16, #tpu.memory_space<vmem>>, %arg6: memref<16x128xbf16, #tpu.memory_space<vmem>>, %arg7: memref<144x128xbf16, #tpu.memory_space<vmem>>, %arg8: memref<16x128xbf16, #tpu.memory_space<vmem>>, %arg9: memref<1x128xf32, #tpu.memory_space<vmem>>, %arg10: memref<64x128xf32, #tpu.memory_space<vmem>>) attributes {dimension_semantics = [#tpu.dimension_semantics<parallel>], iteration_bounds = array<i64: 2>, scalar_prefetch = 0 : i64, scratch_operands = 0 : i64, tpu.core_type = #tpu.core_type<tc>, window_params = [{transform_indices = @transform_0, window_bounds = array<i64: 64, 8>}, {transform_indices = @transform_1, window_bounds = array<i64: 64, 16>}, {transform_indices = @transform_2, window_bounds = array<i64: 64, 144>}, {transform_indices = @transform_3, window_bounds = array<i64: 64, 16>}, {pipeline_mode = #tpu.pipeline_mode<synchronous>, transform_indices = @transform_4, window_bounds = array<i64: 8, 128>}, {pipeline_mode = #tpu.pipeline_mode<synchronous>, transform_indices = @transform_5, window_bounds = array<i64: 16, 128>}, {pipeline_mode = #tpu.pipeline_mode<synchronous>, transform_indices = @transform_6, window_bounds = array<i64: 144, 128>}, {pipeline_mode = #tpu.pipeline_mode<synchronous>, transform_indices = @transform_7, window_bounds = array<i64: 16, 128>}, {pipeline_mode = #tpu.pipeline_mode<synchronous>, transform_indices = @transform_8, window_bounds = array<i64: 1, 128>}, {transform_indices = @transform_9, window_bounds = array<i64: 64, 128>}]} {
    %c0 = arith.constant 0 : index
    %c0_0 = arith.constant 0 : index
    %0 = vector.load %arg1[%c0, %c0_0] : memref<64x8xbf16, #tpu.memory_space<vmem>>, vector<64x8xbf16>
    %c0_1 = arith.constant 0 : index
    %c0_2 = arith.constant 0 : index
    %1 = vector.load %arg5[%c0_1, %c0_2] : memref<8x128xbf16, #tpu.memory_space<vmem>>, vector<8x128xbf16>
    %cst = arith.constant dense<0.000000e+00> : vector<64x128xf32>
    %2 = tpu.matmul %0, %1, %cst {dimension_numbers = #tpu.dot_dimension_numbers<[1], [0], [0], [1], [0, 0, 1, 1], [], []>} : vector<64x8xbf16>, vector<8x128xbf16>, vector<64x128xf32> -> vector<64x128xf32>
    %c0_3 = arith.constant 0 : index
    %c0_4 = arith.constant 0 : index
    %3 = vector.load %arg2[%c0_3, %c0_4] : memref<64x16xbf16, #tpu.memory_space<vmem>>, vector<64x16xbf16>
    %c0_5 = arith.constant 0 : index
    %c0_6 = arith.constant 0 : index
    %4 = vector.load %arg6[%c0_5, %c0_6] : memref<16x128xbf16, #tpu.memory_space<vmem>>, vector<16x128xbf16>
    %cst_7 = arith.constant dense<0.000000e+00> : vector<64x128xf32>
    %5 = tpu.matmul %3, %4, %cst_7 {dimension_numbers = #tpu.dot_dimension_numbers<[1], [0], [0], [1], [0, 0, 1, 1], [], []>} : vector<64x16xbf16>, vector<16x128xbf16>, vector<64x128xf32> -> vector<64x128xf32>
    %6 = arith.addf %2, %5 : vector<64x128xf32>
    %c0_8 = arith.constant 0 : index
    %c0_9 = arith.constant 0 : index
    %7 = vector.load %arg3[%c0_8, %c0_9] : memref<64x144xbf16, #tpu.memory_space<vmem>>, vector<64x144xbf16>
    %c0_10 = arith.constant 0 : index
    %c0_11 = arith.constant 0 : index
    %8 = vector.load %arg7[%c0_10, %c0_11] : memref<144x128xbf16, #tpu.memory_space<vmem>>, vector<144x128xbf16>
    %cst_12 = arith.constant dense<0.000000e+00> : vector<64x128xf32>
    %9 = tpu.matmul %7, %8, %cst_12 {dimension_numbers = #tpu.dot_dimension_numbers<[1], [0], [0], [1], [0, 0, 1, 1], [], []>} : vector<64x144xbf16>, vector<144x128xbf16>, vector<64x128xf32> -> vector<64x128xf32>
    %10 = arith.addf %6, %9 : vector<64x128xf32>
    %c0_13 = arith.constant 0 : index
    %c0_14 = arith.constant 0 : index
    %11 = vector.load %arg4[%c0_13, %c0_14] : memref<64x16xbf16, #tpu.memory_space<vmem>>, vector<64x16xbf16>
    %c0_15 = arith.constant 0 : index
    %c0_16 = arith.constant 0 : index
    %12 = vector.load %arg8[%c0_15, %c0_16] : memref<16x128xbf16, #tpu.memory_space<vmem>>, vector<16x128xbf16>
    %cst_17 = arith.constant dense<0.000000e+00> : vector<64x128xf32>
    %13 = tpu.matmul %11, %12, %cst_17 {dimension_numbers = #tpu.dot_dimension_numbers<[1], [0], [0], [1], [0, 0, 1, 1], [], []>} : vector<64x16xbf16>, vector<16x128xbf16>, vector<64x128xf32> -> vector<64x128xf32>
    %14 = arith.addf %10, %13 : vector<64x128xf32>
    %c0_18 = arith.constant 0 : index
    %c0_19 = arith.constant 0 : index
    %15 = vector.load %arg9[%c0_18, %c0_19] : memref<1x128xf32, #tpu.memory_space<vmem>>, vector<1x128xf32>
    %16 = vector.broadcast %15 : vector<1x128xf32> to vector<64x128xf32>
    %17 = arith.addf %14, %16 : vector<64x128xf32>
    %cst_20 = arith.constant 0.000000e+00 : f32
    %18 = vector.broadcast %cst_20 : f32 to vector<64x128xf32>
    %19 = arith.subf %18, %17 : vector<64x128xf32>
    %20 = math.exp %19 : vector<64x128xf32>
    %cst_21 = arith.constant 1.000000e+00 : f32
    %21 = vector.broadcast %cst_21 : f32 to vector<64x128xf32>
    %22 = arith.addf %21, %20 : vector<64x128xf32>
    %23 = tpu.reciprocal %22 {approx = true} : vector<64x128xf32> -> vector<64x128xf32>
    %24 = arith.mulf %17, %23 : vector<64x128xf32>
    %c0_22 = arith.constant 0 : index
    %c0_23 = arith.constant 0 : index
    %25 = vector.load %arg10[%c0_22, %c0_23] : memref<64x128xf32, #tpu.memory_space<vmem>>, vector<64x128xf32>
    tpu.vector_store %arg10[%c0_22, %c0_23], %24 {strides = array<i32>} : memref<64x128xf32, #tpu.memory_space<vmem>>, vector<64x128xf32>,
    return
  }
  func.func @transform_0(%arg0: i32) -> (i32, i32) {
    %c0_i32 = arith.constant 0 : i32
    %c0_i32_0 = arith.constant 0 : i32
    return %arg0, %c0_i32 : i32, i32
  }
  func.func @transform_1(%arg0: i32) -> (i32, i32) {
    %c0_i32 = arith.constant 0 : i32
    %c0_i32_0 = arith.constant 0 : i32
    return %arg0, %c0_i32 : i32, i32
  }
  func.func @transform_2(%arg0: i32) -> (i32, i32) {
    %c0_i32 = arith.constant 0 : i32
    %c0_i32_0 = arith.constant 0 : i32
    return %arg0, %c0_i32 : i32, i32
  }
  func.func @transform_3(%arg0: i32) -> (i32, i32) {
    %c0_i32 = arith.constant 0 : i32
    %c0_i32_0 = arith.constant 0 : i32
    return %arg0, %c0_i32 : i32, i32
  }
  func.func @transform_4(%arg0: i32) -> (i32, i32) {
    %c0_i32 = arith.constant 0 : i32
    %c0_i32_0 = arith.constant 0 : i32
    %c0_i32_1 = arith.constant 0 : i32
    return %c0_i32, %c0_i32_0 : i32, i32
  }
  func.func @transform_5(%arg0: i32) -> (i32, i32) {
    %c0_i32 = arith.constant 0 : i32
    %c0_i32_0 = arith.constant 0 : i32
    %c0_i32_1 = arith.constant 0 : i32
    return %c0_i32, %c0_i32_0 : i32, i32
  }
  func.func @transform_6(%arg0: i32) -> (i32, i32) {
    %c0_i32 = arith.constant 0 : i32
    %c0_i32_0 = arith.constant 0 : i32
    %c0_i32_1 = arith.constant 0 : i32
    return %c0_i32, %c0_i32_0 : i32, i32
  }
  func.func @transform_7(%arg0: i32) -> (i32, i32) {
    %c0_i32 = arith.constant 0 : i32
    %c0_i32_0 = arith.constant 0 : i32
    %c0_i32_1 = arith.constant 0 : i32
    return %c0_i32, %c0_i32_0 : i32, i32
  }
  func.func @transform_8(%arg0: i32) -> (i32, i32) {
    %c0_i32 = arith.constant 0 : i32
    %c0_i32_0 = arith.constant 0 : i32
    %c0_i32_1 = arith.constant 0 : i32
    return %c0_i32, %c0_i32_0 : i32, i32
  }
  func.func @transform_9(%arg0: i32) -> (i32, i32) {
    %c0_i32 = arith.constant 0 : i32
    %c0_i32_0 = arith.constant 0 : i32
    return %arg0, %c0_i32 : i32, i32
  }
}

module attributes {stable_mosaic.version = 11 : i64} {
  func.func @kernel(%arg0: i32, %arg1: memref<1x8x8x128xf32, #tpu.memory_space<vmem>>, %arg2: memref<25x128xf32, #tpu.memory_space<vmem>>, %arg3: memref<1x128xf32, #tpu.memory_space<vmem>>, %arg4: memref<1x8x8x128xbf16, #tpu.memory_space<vmem>>, %arg5: memref<12x24x128xf32, #tpu.memory_space<vmem>>) attributes {dimension_semantics = [#tpu.dimension_semantics<parallel>], iteration_bounds = array<i64: 2>, scalar_prefetch = 0 : i64, scratch_operands = 1 : i64, tpu.core_type = #tpu.core_type<tc>, window_params = [{transform_indices = @transform_0, window_bounds = array<i64: 1, 8, 8, 128>}, {pipeline_mode = #tpu.pipeline_mode<synchronous>, transform_indices = @transform_1, window_bounds = array<i64: 25, 128>}, {pipeline_mode = #tpu.pipeline_mode<synchronous>, transform_indices = @transform_2, window_bounds = array<i64: 1, 128>}, {transform_indices = @transform_3, window_bounds = array<i64: 1, 8, 8, 128>}]} {
    %c0 = arith.constant 0 : index
    %c0_0 = arith.constant 0 : index
    %c0_1 = arith.constant 0 : index
    %c0_2 = arith.constant 0 : index
    %0 = vector.load %arg1[%c0, %c0_0, %c0_1, %c0_2] : memref<1x8x8x128xf32, #tpu.memory_space<vmem>>, vector<1x8x8x128xf32>
    %1 = vector.shape_cast %0 : vector<1x8x8x128xf32> to vector<8x8x128xf32>
    %cst = arith.constant 0.000000e+00 : f32
    %2 = vector.broadcast %cst : f32 to vector<2x24x128xf32>
    %c0_3 = arith.constant 0 : index
    %c0_4 = arith.constant 0 : index
    %c0_5 = arith.constant 0 : index
    %3 = vector.load %arg5[%c0_3, %c0_4, %c0_5] : memref<12x24x128xf32, #tpu.memory_space<vmem>>, vector<2x24x128xf32>
    tpu.vector_store %arg5[%c0_3, %c0_4, %c0_5], %2 {strides = array<i32>} : memref<12x24x128xf32, #tpu.memory_space<vmem>>, vector<2x24x128xf32>,
    %cst_6 = arith.constant 0.000000e+00 : f32
    %4 = vector.broadcast %cst_6 : f32 to vector<2x24x128xf32>
    %c10 = arith.constant 10 : index
    %c0_7 = arith.constant 0 : index
    %c0_8 = arith.constant 0 : index
    %5 = vector.load %arg5[%c10, %c0_7, %c0_8] : memref<12x24x128xf32, #tpu.memory_space<vmem>>, vector<2x24x128xf32>
    tpu.vector_store %arg5[%c10, %c0_7, %c0_8], %4 {strides = array<i32>} : memref<12x24x128xf32, #tpu.memory_space<vmem>>, vector<2x24x128xf32>,
    %cst_9 = arith.constant 0.000000e+00 : f32
    %6 = vector.broadcast %cst_9 : f32 to vector<8x8x128xf32>
    %c2 = arith.constant 2 : index
    %c0_10 = arith.constant 0 : index
    %c0_11 = arith.constant 0 : index
    %7 = vector.load %arg5[%c2, %c0_10, %c0_11] : memref<12x24x128xf32, #tpu.memory_space<vmem>>, vector<8x8x128xf32>
    tpu.vector_store %arg5[%c2, %c0_10, %c0_11], %6 {strides = array<i32>} : memref<12x24x128xf32, #tpu.memory_space<vmem>>, vector<8x8x128xf32>,
    %cst_12 = arith.constant 0.000000e+00 : f32
    %8 = vector.broadcast %cst_12 : f32 to vector<8x8x128xf32>
    %c2_13 = arith.constant 2 : index
    %c16 = arith.constant 16 : index
    %c0_14 = arith.constant 0 : index
    %9 = vector.load %arg5[%c2_13, %c16, %c0_14] : memref<12x24x128xf32, #tpu.memory_space<vmem>>, vector<8x8x128xf32>
    tpu.vector_store %arg5[%c2_13, %c16, %c0_14], %8 {strides = array<i32>} : memref<12x24x128xf32, #tpu.memory_space<vmem>>, vector<8x8x128xf32>,
    %c2_15 = arith.constant 2 : index
    %c8 = arith.constant 8 : index
    %c0_16 = arith.constant 0 : index
    %10 = vector.load %arg5[%c2_15, %c8, %c0_16] : memref<12x24x128xf32, #tpu.memory_space<vmem>>, vector<8x8x128xf32>
    tpu.vector_store %arg5[%c2_15, %c8, %c0_16], %1 {strides = array<i32>} : memref<12x24x128xf32, #tpu.memory_space<vmem>>, vector<8x8x128xf32>,
    %c0_17 = arith.constant 0 : index
    %c0_18 = arith.constant 0 : index
    %11 = vector.load %arg2[%c0_17, %c0_18] : memref<25x128xf32, #tpu.memory_space<vmem>>, vector<25x128xf32>
    %c0_19 = arith.constant 0 : index
    %c0_20 = arith.constant 0 : index
    %c0_21 = arith.constant 0 : index
    %12 = vector.load %arg5[%c0_19, %c0_20, %c0_21] : memref<12x24x128xf32, #tpu.memory_space<vmem>>, vector<12x24x128xf32>
    %cst_22 = arith.constant 0.000000e+00 : f32
    %13 = vector.broadcast %cst_22 : f32 to vector<8x8x128xf32>
    %c2_i32 = arith.constant 2 : i32
    %14 = tpu.dynamic_rotate %12 by %c2_i32 dim 1 : vector<12x24x128xf32>, i32 -> vector<12x24x128xf32>
    %15 = vector.extract_strided_slice %14 {offsets = [0, 8, 0], sizes = [8, 8, 128], strides = [1, 1, 1]} : vector<12x24x128xf32> to vector<8x8x128xf32>
    %16 = vector.extract_strided_slice %11 {offsets = [0, 0], sizes = [1, 128], strides = [1, 1]} : vector<25x128xf32> to vector<1x128xf32>
    %17 = vector.shape_cast %16 : vector<1x128xf32> to vector<128xf32>
    %18 = vector.shape_cast %17 : vector<128xf32> to vector<1x1x128xf32>
    %19 = vector.broadcast %18 : vector<1x1x128xf32> to vector<8x8x128xf32>
    %20 = arith.mulf %15, %19 : vector<8x8x128xf32>
    %21 = arith.addf %13, %20 : vector<8x8x128xf32>
    %22 = vector.extract_strided_slice %14 {offsets = [1, 8, 0], sizes = [8, 8, 128], strides = [1, 1, 1]} : vector<12x24x128xf32> to vector<8x8x128xf32>
    %23 = vector.extract_strided_slice %11 {offsets = [5, 0], sizes = [1, 128], strides = [1, 1]} : vector<25x128xf32> to vector<1x128xf32>
    %24 = vector.shape_cast %23 : vector<1x128xf32> to vector<128xf32>
    %25 = vector.shape_cast %24 : vector<128xf32> to vector<1x1x128xf32>
    %26 = vector.broadcast %25 : vector<1x1x128xf32> to vector<8x8x128xf32>
    %27 = arith.mulf %22, %26 : vector<8x8x128xf32>
    %28 = arith.addf %21, %27 : vector<8x8x128xf32>
    %29 = vector.extract_strided_slice %14 {offsets = [2, 8, 0], sizes = [8, 8, 128], strides = [1, 1, 1]} : vector<12x24x128xf32> to vector<8x8x128xf32>
    %30 = vector.extract_strided_slice %11 {offsets = [10, 0], sizes = [1, 128], strides = [1, 1]} : vector<25x128xf32> to vector<1x128xf32>
    %31 = vector.shape_cast %30 : vector<1x128xf32> to vector<128xf32>
    %32 = vector.shape_cast %31 : vector<128xf32> to vector<1x1x128xf32>
    %33 = vector.broadcast %32 : vector<1x1x128xf32> to vector<8x8x128xf32>
    %34 = arith.mulf %29, %33 : vector<8x8x128xf32>
    %35 = arith.addf %28, %34 : vector<8x8x128xf32>
    %36 = vector.extract_strided_slice %14 {offsets = [3, 8, 0], sizes = [8, 8, 128], strides = [1, 1, 1]} : vector<12x24x128xf32> to vector<8x8x128xf32>
    %37 = vector.extract_strided_slice %11 {offsets = [15, 0], sizes = [1, 128], strides = [1, 1]} : vector<25x128xf32> to vector<1x128xf32>
    %38 = vector.shape_cast %37 : vector<1x128xf32> to vector<128xf32>
    %39 = vector.shape_cast %38 : vector<128xf32> to vector<1x1x128xf32>
    %40 = vector.broadcast %39 : vector<1x1x128xf32> to vector<8x8x128xf32>
    %41 = arith.mulf %36, %40 : vector<8x8x128xf32>
    %42 = arith.addf %35, %41 : vector<8x8x128xf32>
    %43 = vector.extract_strided_slice %14 {offsets = [4, 8, 0], sizes = [8, 8, 128], strides = [1, 1, 1]} : vector<12x24x128xf32> to vector<8x8x128xf32>
    %44 = vector.extract_strided_slice %11 {offsets = [20, 0], sizes = [1, 128], strides = [1, 1]} : vector<25x128xf32> to vector<1x128xf32>
    %45 = vector.shape_cast %44 : vector<1x128xf32> to vector<128xf32>
    %46 = vector.shape_cast %45 : vector<128xf32> to vector<1x1x128xf32>
    %47 = vector.broadcast %46 : vector<1x1x128xf32> to vector<8x8x128xf32>
    %48 = arith.mulf %43, %47 : vector<8x8x128xf32>
    %49 = arith.addf %42, %48 : vector<8x8x128xf32>
    %c1_i32 = arith.constant 1 : i32
    %50 = tpu.dynamic_rotate %12 by %c1_i32 dim 1 : vector<12x24x128xf32>, i32 -> vector<12x24x128xf32>
    %51 = vector.extract_strided_slice %50 {offsets = [0, 8, 0], sizes = [8, 8, 128], strides = [1, 1, 1]} : vector<12x24x128xf32> to vector<8x8x128xf32>
    %52 = vector.extract_strided_slice %11 {offsets = [1, 0], sizes = [1, 128], strides = [1, 1]} : vector<25x128xf32> to vector<1x128xf32>
    %53 = vector.shape_cast %52 : vector<1x128xf32> to vector<128xf32>
    %54 = vector.shape_cast %53 : vector<128xf32> to vector<1x1x128xf32>
    %55 = vector.broadcast %54 : vector<1x1x128xf32> to vector<8x8x128xf32>
    %56 = arith.mulf %51, %55 : vector<8x8x128xf32>
    %57 = arith.addf %49, %56 : vector<8x8x128xf32>
    %58 = vector.extract_strided_slice %50 {offsets = [1, 8, 0], sizes = [8, 8, 128], strides = [1, 1, 1]} : vector<12x24x128xf32> to vector<8x8x128xf32>
    %59 = vector.extract_strided_slice %11 {offsets = [6, 0], sizes = [1, 128], strides = [1, 1]} : vector<25x128xf32> to vector<1x128xf32>
    %60 = vector.shape_cast %59 : vector<1x128xf32> to vector<128xf32>
    %61 = vector.shape_cast %60 : vector<128xf32> to vector<1x1x128xf32>
    %62 = vector.broadcast %61 : vector<1x1x128xf32> to vector<8x8x128xf32>
    %63 = arith.mulf %58, %62 : vector<8x8x128xf32>
    %64 = arith.addf %57, %63 : vector<8x8x128xf32>
    %65 = vector.extract_strided_slice %50 {offsets = [2, 8, 0], sizes = [8, 8, 128], strides = [1, 1, 1]} : vector<12x24x128xf32> to vector<8x8x128xf32>
    %66 = vector.extract_strided_slice %11 {offsets = [11, 0], sizes = [1, 128], strides = [1, 1]} : vector<25x128xf32> to vector<1x128xf32>
    %67 = vector.shape_cast %66 : vector<1x128xf32> to vector<128xf32>
    %68 = vector.shape_cast %67 : vector<128xf32> to vector<1x1x128xf32>
    %69 = vector.broadcast %68 : vector<1x1x128xf32> to vector<8x8x128xf32>
    %70 = arith.mulf %65, %69 : vector<8x8x128xf32>
    %71 = arith.addf %64, %70 : vector<8x8x128xf32>
    %72 = vector.extract_strided_slice %50 {offsets = [3, 8, 0], sizes = [8, 8, 128], strides = [1, 1, 1]} : vector<12x24x128xf32> to vector<8x8x128xf32>
    %73 = vector.extract_strided_slice %11 {offsets = [16, 0], sizes = [1, 128], strides = [1, 1]} : vector<25x128xf32> to vector<1x128xf32>
    %74 = vector.shape_cast %73 : vector<1x128xf32> to vector<128xf32>
    %75 = vector.shape_cast %74 : vector<128xf32> to vector<1x1x128xf32>
    %76 = vector.broadcast %75 : vector<1x1x128xf32> to vector<8x8x128xf32>
    %77 = arith.mulf %72, %76 : vector<8x8x128xf32>
    %78 = arith.addf %71, %77 : vector<8x8x128xf32>
    %79 = vector.extract_strided_slice %50 {offsets = [4, 8, 0], sizes = [8, 8, 128], strides = [1, 1, 1]} : vector<12x24x128xf32> to vector<8x8x128xf32>
    %80 = vector.extract_strided_slice %11 {offsets = [21, 0], sizes = [1, 128], strides = [1, 1]} : vector<25x128xf32> to vector<1x128xf32>
    %81 = vector.shape_cast %80 : vector<1x128xf32> to vector<128xf32>
    %82 = vector.shape_cast %81 : vector<128xf32> to vector<1x1x128xf32>
    %83 = vector.broadcast %82 : vector<1x1x128xf32> to vector<8x8x128xf32>
    %84 = arith.mulf %79, %83 : vector<8x8x128xf32>
    %85 = arith.addf %78, %84 : vector<8x8x128xf32>
    %86 = vector.extract_strided_slice %12 {offsets = [0, 8, 0], sizes = [8, 8, 128], strides = [1, 1, 1]} : vector<12x24x128xf32> to vector<8x8x128xf32>
    %87 = vector.extract_strided_slice %11 {offsets = [2, 0], sizes = [1, 128], strides = [1, 1]} : vector<25x128xf32> to vector<1x128xf32>
    %88 = vector.shape_cast %87 : vector<1x128xf32> to vector<128xf32>
    %89 = vector.shape_cast %88 : vector<128xf32> to vector<1x1x128xf32>
    %90 = vector.broadcast %89 : vector<1x1x128xf32> to vector<8x8x128xf32>
    %91 = arith.mulf %86, %90 : vector<8x8x128xf32>
    %92 = arith.addf %85, %91 : vector<8x8x128xf32>
    %93 = vector.extract_strided_slice %12 {offsets = [1, 8, 0], sizes = [8, 8, 128], strides = [1, 1, 1]} : vector<12x24x128xf32> to vector<8x8x128xf32>
    %94 = vector.extract_strided_slice %11 {offsets = [7, 0], sizes = [1, 128], strides = [1, 1]} : vector<25x128xf32> to vector<1x128xf32>
    %95 = vector.shape_cast %94 : vector<1x128xf32> to vector<128xf32>
    %96 = vector.shape_cast %95 : vector<128xf32> to vector<1x1x128xf32>
    %97 = vector.broadcast %96 : vector<1x1x128xf32> to vector<8x8x128xf32>
    %98 = arith.mulf %93, %97 : vector<8x8x128xf32>
    %99 = arith.addf %92, %98 : vector<8x8x128xf32>
    %100 = vector.extract_strided_slice %12 {offsets = [2, 8, 0], sizes = [8, 8, 128], strides = [1, 1, 1]} : vector<12x24x128xf32> to vector<8x8x128xf32>
    %101 = vector.extract_strided_slice %11 {offsets = [12, 0], sizes = [1, 128], strides = [1, 1]} : vector<25x128xf32> to vector<1x128xf32>
    %102 = vector.shape_cast %101 : vector<1x128xf32> to vector<128xf32>
    %103 = vector.shape_cast %102 : vector<128xf32> to vector<1x1x128xf32>
    %104 = vector.broadcast %103 : vector<1x1x128xf32> to vector<8x8x128xf32>
    %105 = arith.mulf %100, %104 : vector<8x8x128xf32>
    %106 = arith.addf %99, %105 : vector<8x8x128xf32>
    %107 = vector.extract_strided_slice %12 {offsets = [3, 8, 0], sizes = [8, 8, 128], strides = [1, 1, 1]} : vector<12x24x128xf32> to vector<8x8x128xf32>
    %108 = vector.extract_strided_slice %11 {offsets = [17, 0], sizes = [1, 128], strides = [1, 1]} : vector<25x128xf32> to vector<1x128xf32>
    %109 = vector.shape_cast %108 : vector<1x128xf32> to vector<128xf32>
    %110 = vector.shape_cast %109 : vector<128xf32> to vector<1x1x128xf32>
    %111 = vector.broadcast %110 : vector<1x1x128xf32> to vector<8x8x128xf32>
    %112 = arith.mulf %107, %111 : vector<8x8x128xf32>
    %113 = arith.addf %106, %112 : vector<8x8x128xf32>
    %114 = vector.extract_strided_slice %12 {offsets = [4, 8, 0], sizes = [8, 8, 128], strides = [1, 1, 1]} : vector<12x24x128xf32> to vector<8x8x128xf32>
    %115 = vector.extract_strided_slice %11 {offsets = [22, 0], sizes = [1, 128], strides = [1, 1]} : vector<25x128xf32> to vector<1x128xf32>
    %116 = vector.shape_cast %115 : vector<1x128xf32> to vector<128xf32>
    %117 = vector.shape_cast %116 : vector<128xf32> to vector<1x1x128xf32>
    %118 = vector.broadcast %117 : vector<1x1x128xf32> to vector<8x8x128xf32>
    %119 = arith.mulf %114, %118 : vector<8x8x128xf32>
    %120 = arith.addf %113, %119 : vector<8x8x128xf32>
    %c23_i32 = arith.constant 23 : i32
    %121 = tpu.dynamic_rotate %12 by %c23_i32 dim 1 : vector<12x24x128xf32>, i32 -> vector<12x24x128xf32>
    %122 = vector.extract_strided_slice %121 {offsets = [0, 8, 0], sizes = [8, 8, 128], strides = [1, 1, 1]} : vector<12x24x128xf32> to vector<8x8x128xf32>
    %123 = vector.extract_strided_slice %11 {offsets = [3, 0], sizes = [1, 128], strides = [1, 1]} : vector<25x128xf32> to vector<1x128xf32>
    %124 = vector.shape_cast %123 : vector<1x128xf32> to vector<128xf32>
    %125 = vector.shape_cast %124 : vector<128xf32> to vector<1x1x128xf32>
    %126 = vector.broadcast %125 : vector<1x1x128xf32> to vector<8x8x128xf32>
    %127 = arith.mulf %122, %126 : vector<8x8x128xf32>
    %128 = arith.addf %120, %127 : vector<8x8x128xf32>
    %129 = vector.extract_strided_slice %121 {offsets = [1, 8, 0], sizes = [8, 8, 128], strides = [1, 1, 1]} : vector<12x24x128xf32> to vector<8x8x128xf32>
    %130 = vector.extract_strided_slice %11 {offsets = [8, 0], sizes = [1, 128], strides = [1, 1]} : vector<25x128xf32> to vector<1x128xf32>
    %131 = vector.shape_cast %130 : vector<1x128xf32> to vector<128xf32>
    %132 = vector.shape_cast %131 : vector<128xf32> to vector<1x1x128xf32>
    %133 = vector.broadcast %132 : vector<1x1x128xf32> to vector<8x8x128xf32>
    %134 = arith.mulf %129, %133 : vector<8x8x128xf32>
    %135 = arith.addf %128, %134 : vector<8x8x128xf32>
    %136 = vector.extract_strided_slice %121 {offsets = [2, 8, 0], sizes = [8, 8, 128], strides = [1, 1, 1]} : vector<12x24x128xf32> to vector<8x8x128xf32>
    %137 = vector.extract_strided_slice %11 {offsets = [13, 0], sizes = [1, 128], strides = [1, 1]} : vector<25x128xf32> to vector<1x128xf32>
    %138 = vector.shape_cast %137 : vector<1x128xf32> to vector<128xf32>
    %139 = vector.shape_cast %138 : vector<128xf32> to vector<1x1x128xf32>
    %140 = vector.broadcast %139 : vector<1x1x128xf32> to vector<8x8x128xf32>
    %141 = arith.mulf %136, %140 : vector<8x8x128xf32>
    %142 = arith.addf %135, %141 : vector<8x8x128xf32>
    %143 = vector.extract_strided_slice %121 {offsets = [3, 8, 0], sizes = [8, 8, 128], strides = [1, 1, 1]} : vector<12x24x128xf32> to vector<8x8x128xf32>
    %144 = vector.extract_strided_slice %11 {offsets = [18, 0], sizes = [1, 128], strides = [1, 1]} : vector<25x128xf32> to vector<1x128xf32>
    %145 = vector.shape_cast %144 : vector<1x128xf32> to vector<128xf32>
    %146 = vector.shape_cast %145 : vector<128xf32> to vector<1x1x128xf32>
    %147 = vector.broadcast %146 : vector<1x1x128xf32> to vector<8x8x128xf32>
    %148 = arith.mulf %143, %147 : vector<8x8x128xf32>
    %149 = arith.addf %142, %148 : vector<8x8x128xf32>
    %150 = vector.extract_strided_slice %121 {offsets = [4, 8, 0], sizes = [8, 8, 128], strides = [1, 1, 1]} : vector<12x24x128xf32> to vector<8x8x128xf32>
    %151 = vector.extract_strided_slice %11 {offsets = [23, 0], sizes = [1, 128], strides = [1, 1]} : vector<25x128xf32> to vector<1x128xf32>
    %152 = vector.shape_cast %151 : vector<1x128xf32> to vector<128xf32>
    %153 = vector.shape_cast %152 : vector<128xf32> to vector<1x1x128xf32>
    %154 = vector.broadcast %153 : vector<1x1x128xf32> to vector<8x8x128xf32>
    %155 = arith.mulf %150, %154 : vector<8x8x128xf32>
    %156 = arith.addf %149, %155 : vector<8x8x128xf32>
    %c22_i32 = arith.constant 22 : i32
    %157 = tpu.dynamic_rotate %12 by %c22_i32 dim 1 : vector<12x24x128xf32>, i32 -> vector<12x24x128xf32>
    %158 = vector.extract_strided_slice %157 {offsets = [0, 8, 0], sizes = [8, 8, 128], strides = [1, 1, 1]} : vector<12x24x128xf32> to vector<8x8x128xf32>
    %159 = vector.extract_strided_slice %11 {offsets = [4, 0], sizes = [1, 128], strides = [1, 1]} : vector<25x128xf32> to vector<1x128xf32>
    %160 = vector.shape_cast %159 : vector<1x128xf32> to vector<128xf32>
    %161 = vector.shape_cast %160 : vector<128xf32> to vector<1x1x128xf32>
    %162 = vector.broadcast %161 : vector<1x1x128xf32> to vector<8x8x128xf32>
    %163 = arith.mulf %158, %162 : vector<8x8x128xf32>
    %164 = arith.addf %156, %163 : vector<8x8x128xf32>
    %165 = vector.extract_strided_slice %157 {offsets = [1, 8, 0], sizes = [8, 8, 128], strides = [1, 1, 1]} : vector<12x24x128xf32> to vector<8x8x128xf32>
    %166 = vector.extract_strided_slice %11 {offsets = [9, 0], sizes = [1, 128], strides = [1, 1]} : vector<25x128xf32> to vector<1x128xf32>
    %167 = vector.shape_cast %166 : vector<1x128xf32> to vector<128xf32>
    %168 = vector.shape_cast %167 : vector<128xf32> to vector<1x1x128xf32>
    %169 = vector.broadcast %168 : vector<1x1x128xf32> to vector<8x8x128xf32>
    %170 = arith.mulf %165, %169 : vector<8x8x128xf32>
    %171 = arith.addf %164, %170 : vector<8x8x128xf32>
    %172 = vector.extract_strided_slice %157 {offsets = [2, 8, 0], sizes = [8, 8, 128], strides = [1, 1, 1]} : vector<12x24x128xf32> to vector<8x8x128xf32>
    %173 = vector.extract_strided_slice %11 {offsets = [14, 0], sizes = [1, 128], strides = [1, 1]} : vector<25x128xf32> to vector<1x128xf32>
    %174 = vector.shape_cast %173 : vector<1x128xf32> to vector<128xf32>
    %175 = vector.shape_cast %174 : vector<128xf32> to vector<1x1x128xf32>
    %176 = vector.broadcast %175 : vector<1x1x128xf32> to vector<8x8x128xf32>
    %177 = arith.mulf %172, %176 : vector<8x8x128xf32>
    %178 = arith.addf %171, %177 : vector<8x8x128xf32>
    %179 = vector.extract_strided_slice %157 {offsets = [3, 8, 0], sizes = [8, 8, 128], strides = [1, 1, 1]} : vector<12x24x128xf32> to vector<8x8x128xf32>
    %180 = vector.extract_strided_slice %11 {offsets = [19, 0], sizes = [1, 128], strides = [1, 1]} : vector<25x128xf32> to vector<1x128xf32>
    %181 = vector.shape_cast %180 : vector<1x128xf32> to vector<128xf32>
    %182 = vector.shape_cast %181 : vector<128xf32> to vector<1x1x128xf32>
    %183 = vector.broadcast %182 : vector<1x1x128xf32> to vector<8x8x128xf32>
    %184 = arith.mulf %179, %183 : vector<8x8x128xf32>
    %185 = arith.addf %178, %184 : vector<8x8x128xf32>
    %186 = vector.extract_strided_slice %157 {offsets = [4, 8, 0], sizes = [8, 8, 128], strides = [1, 1, 1]} : vector<12x24x128xf32> to vector<8x8x128xf32>
    %187 = vector.extract_strided_slice %11 {offsets = [24, 0], sizes = [1, 128], strides = [1, 1]} : vector<25x128xf32> to vector<1x128xf32>
    %188 = vector.shape_cast %187 : vector<1x128xf32> to vector<128xf32>
    %189 = vector.shape_cast %188 : vector<128xf32> to vector<1x1x128xf32>
    %190 = vector.broadcast %189 : vector<1x1x128xf32> to vector<8x8x128xf32>
    %191 = arith.mulf %186, %190 : vector<8x8x128xf32>
    %192 = arith.addf %185, %191 : vector<8x8x128xf32>
    %c0_23 = arith.constant 0 : index
    %c0_24 = arith.constant 0 : index
    %193 = vector.load %arg3[%c0_23, %c0_24] : memref<1x128xf32, #tpu.memory_space<vmem>>, vector<1x128xf32>
    %194 = vector.shape_cast %193 : vector<1x128xf32> to vector<1x1x128xf32>
    %195 = vector.broadcast %194 : vector<1x1x128xf32> to vector<8x8x128xf32>
    %196 = arith.addf %192, %195 : vector<8x8x128xf32>
    %197 = arith.truncf %196 : vector<8x8x128xf32> to vector<8x8x128xbf16>
    %c0_25 = arith.constant 0 : index
    %c0_26 = arith.constant 0 : index
    %c0_27 = arith.constant 0 : index
    %c0_28 = arith.constant 0 : index
    %198 = vector.load %arg4[%c0_25, %c0_26, %c0_27, %c0_28] : memref<1x8x8x128xbf16, #tpu.memory_space<vmem>>, vector<1x8x8x128xbf16>
    %199 = vector.shape_cast %198 : vector<1x8x8x128xbf16> to vector<8x8x128xbf16>
    %200 = vector.shape_cast %197 : vector<8x8x128xbf16> to vector<1x8x8x128xbf16>
    tpu.vector_store %arg4[%c0_25, %c0_26, %c0_27, %c0_28], %200 {strides = array<i32>} : memref<1x8x8x128xbf16, #tpu.memory_space<vmem>>, vector<1x8x8x128xbf16>,
    return
  }
  func.func @transform_0(%arg0: i32) -> (i32, i32, i32, i32) {
    %c0_i32 = arith.constant 0 : i32
    %c0_i32_0 = arith.constant 0 : i32
    %c0_i32_1 = arith.constant 0 : i32
    %c0_i32_2 = arith.constant 0 : i32
    return %arg0, %c0_i32, %c0_i32_0, %c0_i32_1 : i32, i32, i32, i32
  }
  func.func @transform_1(%arg0: i32) -> (i32, i32) {
    %c0_i32 = arith.constant 0 : i32
    %c0_i32_0 = arith.constant 0 : i32
    %c0_i32_1 = arith.constant 0 : i32
    return %c0_i32, %c0_i32_0 : i32, i32
  }
  func.func @transform_2(%arg0: i32) -> (i32, i32) {
    %c0_i32 = arith.constant 0 : i32
    %c0_i32_0 = arith.constant 0 : i32
    %c0_i32_1 = arith.constant 0 : i32
    return %c0_i32, %c0_i32_0 : i32, i32
  }
  func.func @transform_3(%arg0: i32) -> (i32, i32, i32, i32) {
    %c0_i32 = arith.constant 0 : i32
    %c0_i32_0 = arith.constant 0 : i32
    %c0_i32_1 = arith.constant 0 : i32
    %c0_i32_2 = arith.constant 0 : i32
    return %arg0, %c0_i32, %c0_i32_0, %c0_i32_1 : i32, i32, i32, i32
  }
}

module attributes {stable_mosaic.version = 11 : i64} {
  func.func @_pw_mm_res_kernel(%arg0: i32, %arg1: memref<64x128xbf16, #tpu.memory_space<vmem>>, %arg2: memref<128x128xbf16, #tpu.memory_space<vmem>>, %arg3: memref<1x128xf32, #tpu.memory_space<vmem>>, %arg4: memref<64x128xf32, #tpu.memory_space<vmem>>, %arg5: memref<64x128xf32, #tpu.memory_space<vmem>>) attributes {dimension_semantics = [#tpu.dimension_semantics<parallel>], iteration_bounds = array<i64: 2>, scalar_prefetch = 0 : i64, scratch_operands = 0 : i64, tpu.core_type = #tpu.core_type<tc>, window_params = [{transform_indices = @transform_0, window_bounds = array<i64: 64, 128>}, {pipeline_mode = #tpu.pipeline_mode<synchronous>, transform_indices = @transform_1, window_bounds = array<i64: 128, 128>}, {pipeline_mode = #tpu.pipeline_mode<synchronous>, transform_indices = @transform_2, window_bounds = array<i64: 1, 128>}, {transform_indices = @transform_3, window_bounds = array<i64: 64, 128>}, {transform_indices = @transform_4, window_bounds = array<i64: 64, 128>}]} {
    %c0 = arith.constant 0 : index
    %c0_0 = arith.constant 0 : index
    %0 = vector.load %arg1[%c0, %c0_0] : memref<64x128xbf16, #tpu.memory_space<vmem>>, vector<64x128xbf16>
    %c0_1 = arith.constant 0 : index
    %c0_2 = arith.constant 0 : index
    %1 = vector.load %arg2[%c0_1, %c0_2] : memref<128x128xbf16, #tpu.memory_space<vmem>>, vector<128x128xbf16>
    %cst = arith.constant dense<0.000000e+00> : vector<64x128xf32>
    %2 = tpu.matmul %0, %1, %cst {dimension_numbers = #tpu.dot_dimension_numbers<[1], [0], [0], [1], [0, 0, 1, 1], [], []>} : vector<64x128xbf16>, vector<128x128xbf16>, vector<64x128xf32> -> vector<64x128xf32>
    %c0_3 = arith.constant 0 : index
    %c0_4 = arith.constant 0 : index
    %3 = vector.load %arg3[%c0_3, %c0_4] : memref<1x128xf32, #tpu.memory_space<vmem>>, vector<1x128xf32>
    %4 = vector.broadcast %3 : vector<1x128xf32> to vector<64x128xf32>
    %5 = arith.addf %2, %4 : vector<64x128xf32>
    %cst_5 = arith.constant 0.000000e+00 : f32
    %6 = vector.broadcast %cst_5 : f32 to vector<64x128xf32>
    %7 = arith.subf %6, %5 : vector<64x128xf32>
    %8 = math.exp %7 : vector<64x128xf32>
    %cst_6 = arith.constant 1.000000e+00 : f32
    %9 = vector.broadcast %cst_6 : f32 to vector<64x128xf32>
    %10 = arith.addf %9, %8 : vector<64x128xf32>
    %11 = tpu.reciprocal %10 {approx = true} : vector<64x128xf32> -> vector<64x128xf32>
    %12 = arith.mulf %5, %11 : vector<64x128xf32>
    %c0_7 = arith.constant 0 : index
    %c0_8 = arith.constant 0 : index
    %13 = vector.load %arg4[%c0_7, %c0_8] : memref<64x128xf32, #tpu.memory_space<vmem>>, vector<64x128xf32>
    %14 = arith.addf %13, %12 : vector<64x128xf32>
    %c0_9 = arith.constant 0 : index
    %c0_10 = arith.constant 0 : index
    %15 = vector.load %arg5[%c0_9, %c0_10] : memref<64x128xf32, #tpu.memory_space<vmem>>, vector<64x128xf32>
    tpu.vector_store %arg5[%c0_9, %c0_10], %14 {strides = array<i32>} : memref<64x128xf32, #tpu.memory_space<vmem>>, vector<64x128xf32>,
    return
  }
  func.func @transform_0(%arg0: i32) -> (i32, i32) {
    %c0_i32 = arith.constant 0 : i32
    %c0_i32_0 = arith.constant 0 : i32
    return %arg0, %c0_i32 : i32, i32
  }
  func.func @transform_1(%arg0: i32) -> (i32, i32) {
    %c0_i32 = arith.constant 0 : i32
    %c0_i32_0 = arith.constant 0 : i32
    %c0_i32_1 = arith.constant 0 : i32
    return %c0_i32, %c0_i32_0 : i32, i32
  }
  func.func @transform_2(%arg0: i32) -> (i32, i32) {
    %c0_i32 = arith.constant 0 : i32
    %c0_i32_0 = arith.constant 0 : i32
    %c0_i32_1 = arith.constant 0 : i32
    return %c0_i32, %c0_i32_0 : i32, i32
  }
  func.func @transform_3(%arg0: i32) -> (i32, i32) {
    %c0_i32 = arith.constant 0 : i32
    %c0_i32_0 = arith.constant 0 : i32
    return %arg0, %c0_i32 : i32, i32
  }
  func.func @transform_4(%arg0: i32) -> (i32, i32) {
    %c0_i32 = arith.constant 0 : i32
    %c0_i32_0 = arith.constant 0 : i32
    return %arg0, %c0_i32 : i32, i32
  }
}

</mosaic_0001>

<llo_original>
// kernel: mcam_forward.5
$region0: #{mcam_forward.5}
  #allocation0 [shape = 'u32[]', space=smem, size = 0x4, offset = 0x4, fixed_abs, tag = 'smem constant byte address 0x4 - core index']
  #allocation1 [shape = 'u32[144,128]{1,0:T(1,128)}', space=vmem, size = 0x12000, scoped, tag = 'internal scratch']
  %s0 = inlined_call_operand.vmem [shape: bf16[128,128], index: 0, kind: input, shape index: {}]
  %s1 = inlined_call_operand.vmem [shape: bf16[128,128], index: 1, kind: input, shape index: {}]
  %s2 = inlined_call_operand.vmem [shape: f32[1,128], index: 2, kind: input, shape index: {}]
  %s3 = inlined_call_operand.vmem [shape: f32[128,128], index: 3, kind: input, shape index: {}, may-alias: {3,4}]
  %s4 = inlined_call_operand.vmem [shape: f32[128,128], index: 4, kind: output, shape index: {}, may-alias: {3,4}]
  %s5 = sld [smem:[#allocation0]]
  $region49: #{mcam_forward.5} parent=0
    _
  %s7 = ssub.s32 1, %s5
  %s8 = scalar_select 0, %s7, %s5
  loop: start=0, step=1, limit=4
  $region2: #{mcam_forward.5} parent=0 // loop_pre_header
    _
  $region3: #{mcam_forward.5} parent=0 // loop_header
    %s10 = sphi 0, %s14
    %p11 = scmp.ge.s32.totalorder %s10, 4
    %s20 = sphi 0, %s22
    %s23 = sphi 0, %s20
    %s24 = sphi 0, %s23
    %s40 = sphi 0, %s24
    %s44 = sphi 0, %s44
    %s46 = sphi 0, %s44
    %s47 = sphi 0, %s46
    %s61 = sphi 0, %s47
    %s65 = sphi 0, %s65
    %s67 = sphi 0, %s65
    %s68 = sphi 0, %s67
    %s82 = sphi 0, %s68
    %s88 = sphi 0, %s90
    %s91 = sphi 0, %s88
    %s92 = sphi 0, %s91
    %s108 = sphi 0, %s92
    %s114 = sphi 0, %s116
    %s117 = sphi 0, %s114
    %s118 = sphi 0, %s117
    %s134 = sphi 0, %s118
  $region4: #{mcam_forward.5} parent=0 // loop_header_branch
    %13 = sbr.rel (%p11) target = $region8
  $region5: #{mcam_forward.5} parent=0 // loop_body
    %s15 = ssub.s32 %s10, 1
    %s16 = ssub.s32 %s10, 2
    %s17 = sadd.s32 %s10, 1
    %s18 = ssub.s32 %s10, %s17
    %p19 = scmp.eq.s32.totalorder %s18, 0
    %s21 = sadd.s32 %s20, 1
    %s22 = scalar_select %p19, %s20, %s21
    %p25 = pneg %p19
    %p26 = scmp.eq.s32.totalorder %s10, 1
    %p27 = por %p25, %p26
    %p28 = scmp.ne.s32.totalorder %s20, %s23
    %p29 = scmp.eq.s32.totalorder %s10, 0
    %p30 = por %p28, %p29
    %p31 = scmp.ne.s32.totalorder %s20, %s23
    %p32 = scmp.eq.s32.totalorder %s15, 1
    %p33 = por %p31, %p32
    %p34 = scmp.ne.s32.totalorder %s23, %s24
    %p35 = scmp.eq.s32.totalorder %s15, 0
    %p36 = por %p34, %p35
    %p37 = scmp.ne.s32.totalorder %s23, %s24
    %p38 = scmp.eq.s32.totalorder %s16, 1
    %p39 = por %p37, %p38
    %p41 = scmp.ne.s32.totalorder %s24, %s40
    %p42 = scmp.eq.s32.totalorder %s16, 0
    %p43 = por %p41, %p42
    %s45 = sadd.s32 %s44, 1
    %p48 = scmp.eq.s32.totalorder %s10, 1
    %p49 = scmp.ne.s32.totalorder %s44, %s46
    %p50 = scmp.eq.s32.totalorder %s10, 0
    %p51 = por %p49, %p50
    %p52 = scmp.ne.s32.totalorder %s44, %s46
    %p53 = scmp.eq.s32.totalorder %s15, 1
    %p54 = por %p52, %p53
    %p55 = scmp.ne.s32.totalorder %s46, %s47
    %p56 = scmp.eq.s32.totalorder %s15, 0
    %p57 = por %p55, %p56
    %p58 = scmp.ne.s32.totalorder %s46, %s47
    %p59 = scmp.eq.s32.totalorder %s16, 1
    %p60 = por %p58, %p59
    %p62 = scmp.ne.s32.totalorder %s47, %s61
    %p63 = scmp.eq.s32.totalorder %s16, 0
    %p64 = por %p62, %p63
    %s66 = sadd.s32 %s65, 1
    %p69 = scmp.eq.s32.totalorder %s10, 1
    %p70 = scmp.ne.s32.totalorder %s65, %s67
    %p71 = scmp.eq.s32.totalorder %s10, 0
    %p72 = por %p70, %p71
    %p73 = scmp.ne.s32.totalorder %s65, %s67
    %p74 = scmp.eq.s32.totalorder %s15, 1
    %p75 = por %p73, %p74
    %p76 = scmp.ne.s32.totalorder %s67, %s68
    %p77 = scmp.eq.s32.totalorder %s15, 0
    %p78 = por %p76, %p77
    %p79 = scmp.ne.s32.totalorder %s67, %s68
    %p80 = scmp.eq.s32.totalorder %s16, 1
    %p81 = por %p79, %p80
    %p83 = scmp.ne.s32.totalorder %s68, %s82
    %p84 = scmp.eq.s32.totalorder %s16, 0
    %p85 = por %p83, %p84
    %s86 = ssub.s32 %s10, %s17
    %p87 = scmp.eq.s32.totalorder %s86, 0
    %s89 = sadd.s32 %s88, 1
    %s90 = scalar_select %p87, %s88, %s89
    %p93 = pneg %p87
    %p94 = scmp.eq.s32.totalorder %s10, 1
    %p95 = por %p93, %p94
    %p96 = scmp.ne.s32.totalorder %s88, %s91
    %p97 = scmp.eq.s32.totalorder %s10, 0
    %p98 = por %p96, %p97
    %p99 = scmp.ne.s32.totalorder %s88, %s91
    %p100 = scmp.eq.s32.totalorder %s15, 1
    %p101 = por %p99, %p100
    %p102 = scmp.ne.s32.totalorder %s91, %s92
    %p103 = scmp.eq.s32.totalorder %s15, 0
    %p104 = por %p102, %p103
    %p105 = scmp.ne.s32.totalorder %s91, %s92
    %p106 = scmp.eq.s32.totalorder %s16, 1
    %p107 = por %p105, %p106
    %p109 = scmp.ne.s32.totalorder %s92, %s108
    %p110 = scmp.eq.s32.totalorder %s16, 0
    %p111 = por %p109, %p110
    %s112 = ssub.s32 %s10, %s17
    %p113 = scmp.eq.s32.totalorder %s112, 0
    %s115 = sadd.s32 %s114, 1
    %s116 = scalar_select %p113, %s114, %s115
    %p119 = pneg %p113
    %p120 = scmp.eq.s32.totalorder %s10, 1
    %p121 = por %p119, %p120
    %p122 = scmp.ne.s32.totalorder %s114, %s117
    %p123 = scmp.eq.s32.totalorder %s10, 0
    %p124 = por %p122, %p123
    %p125 = scmp.ne.s32.totalorder %s114, %s117
    %p126 = scmp.eq.s32.totalorder %s15, 1
    %p127 = por %p125, %p126
    %p128 = scmp.ne.s32.totalorder %s117, %s118
    %p129 = scmp.eq.s32.totalorder %s15, 0
    %p130 = por %p128, %p129
    %p131 = scmp.ne.s32.totalorder %s117, %s118
    %p132 = scmp.eq.s32.totalorder %s16, 1
    %p133 = por %p131, %p132
    %p135 = scmp.ne.s32.totalorder %s118, %s134
    %p136 = scmp.eq.s32.totalorder %s16, 0
    %p137 = por %p135, %p136
    %p138 = scmp.le.s32.totalorder 1, %s10
    %p139 = scmp.lt.s32.totalorder %s10, 3
    %p140 = pnand %p138, %p139
    %p141 = pneg %p140
    // Predicated region
    $region9: #{mcam_forward.5} parent=5 // pred_check
      _
    $region10: #{mcam_forward.5} parent=5 // pred_check_branch
      %143 = sbr.rel (%p140) target = $region12
    $region11: #{mcam_forward.5} parent=5 // pred_region
      %s144 = ssub.s32 %s10, 1
      // Predicated region
      $region13: #{mcam_forward.5} parent=11 // pred_check
        %p145 = pneg %p57
      $region14: #{mcam_forward.5} parent=11 // pred_check_branch
        %147 = sbr.rel (%p145) target = $region16
      $region15: #{mcam_forward.5} parent=11 // pred_region
        _
      $region16: #{mcam_forward.5} parent=11 // pred_fallthru
        _
      // Predicated region
      $region17: #{mcam_forward.5} parent=11 // pred_check
        %p148 = pneg %p78
      $region18: #{mcam_forward.5} parent=11 // pred_check_branch
        %150 = sbr.rel (%p148) target = $region20
      $region19: #{mcam_forward.5} parent=11 // pred_region
        _
      $region20: #{mcam_forward.5} parent=11 // pred_fallthru
        _
    $region12: #{mcam_forward.5} parent=5 // pred_fallthru
      _
    %p151 = scmp.lt.s32.totalorder %s10, 2
    // Predicated region
    $region21: #{mcam_forward.5} parent=5 // pred_check
      %p152 = pneg %p151
    $region22: #{mcam_forward.5} parent=5 // pred_check_branch
      %154 = sbr.rel (%p152) target = $region24
    $region23: #{mcam_forward.5} parent=5 // pred_region
      // Predicated region
      $region25: #{mcam_forward.5} parent=23 // pred_check
        %p155 = pneg %p30
      $region26: #{mcam_forward.5} parent=23 // pred_check_branch
        %157 = sbr.rel (%p155) target = $region28
      $region27: #{mcam_forward.5} parent=23 // pred_region
        %s158 = smul.u32 8, %s10
        %p159 = scmp.lt.s32.totalorder %s158, 15
        %s160 = scalar_select %p159, %s158, 15
        %s161 = smul.addr %s160, 4
        %s162 = scalar_lea.vmem %s0, %s161
        %s163 = smul.u32 8, %s10
      $region28: #{mcam_forward.5} parent=23 // pred_fallthru
        _
      // Predicated region
      $region29: #{mcam_forward.5} parent=23 // pred_check
        %p164 = pneg %p98
      $region30: #{mcam_forward.5} parent=23 // pred_check_branch
        %166 = sbr.rel (%p164) target = $region32
      $region31: #{mcam_forward.5} parent=23 // pred_region
        %s167 = smul.u32 8, %s10
        %p168 = scmp.lt.s32.totalorder %s167, 15
        %s169 = scalar_select %p168, %s167, 15
        %s170 = smul.addr %s169, 8
        %s171 = scalar_lea.vmem %s3, %s170
        %s172 = smul.u32 8, %s10
      $region32: #{mcam_forward.5} parent=23 // pred_fallthru
        _
    $region24: #{mcam_forward.5} parent=5 // pred_fallthru
      _
    %p173 = scmp.le.s32.totalorder 1, %s10
    %p174 = scmp.lt.s32.totalorder %s10, 3
    %p175 = pnand %p173, %p174
    %p176 = pneg %p175
    // Predicated region
    $region33: #{mcam_forward.5} parent=5 // pred_check
      _
    $region34: #{mcam_forward.5} parent=5 // pred_check_branch
      %178 = sbr.rel (%p175) target = $region36
    $region35: #{mcam_forward.5} parent=5 // pred_region
      %s179 = ssub.s32 %s10, 1
      %s180 = smul.u32 8, %s15
      %p181 = scmp.lt.s32.totalorder %s180, 15
      %s182 = scalar_select %p181, %s180, 15
      %s183 = smul.addr %s182, 4
      %s184 = scalar_lea.vmem %s0, %s183
      %p185 = pneg %p36
      %p186 = pneg %p33
      %p187 = pneg %p57
      %p188 = pneg %p54
      %p189 = pneg %p78
      %p190 = pneg %p75
      %s191 = smul.u32 8, %s15
      %p192 = scmp.lt.s32.totalorder %s191, 15
      %s193 = scalar_select %p192, %s191, 15
      %s194 = smul.addr %s193, 8
      %s195 = scalar_lea.vmem %s3, %s194
      %p196 = pneg %p104
      %p197 = pneg %p101
      %p198 = pneg %p130
      %p199 = pneg %p127
      %s200 = smul.u32 8, %s15
      %p201 = scmp.lt.s32.totalorder %s200, 15
      %s202 = scalar_select %p201, %s200, 15
      %s203 = smul.addr %s202, 8
      %s204 = scalar_lea.vmem %s4, %s203
      %s205 = smul.u32 8, %s15
      %p206 = scmp.lt.s32.totalorder %s205, 15
      %s207 = scalar_select %p206, %s205, 15
      %s208 = smul.addr %s207, 4
      %s209 = scalar_lea.vmem %s0, %s208
      %s210 = smul.u32 8, %s15
      %s211 = smul.u32 8, %s15
      %p212 = scmp.lt.s32.totalorder %s211, 15
      %s213 = scalar_select %p212, %s211, 15
      %s214 = smul.addr %s213, 8
      %s215 = scalar_lea.vmem %s3, %s214
      %s216 = smul.u32 8, %s15
      %s217 = smul.u32 8, %s15
      %p218 = scmp.lt.s32.totalorder %s217, 15
      %s219 = scalar_select %p218, %s217, 15
      %s220 = smul.addr %s219, 8
      %s221 = scalar_lea.vmem %s4, %s220
      %s222 = smul.u32 8, %s15
      %v224 = vld [vmem:[%s209] sm:$0xf]
      %v225 = vld [vmem:[%s209 + $0x4] sm:$0xf]
      %v226 = vld [vmem:[%s209 + $0x8] sm:$0xf]
      %v227 = vld [vmem:[%s209 + $0xc] sm:$0xf]
      %v228 = vld [vmem:[%s209 + $0x10] sm:$0xf]
      %v229 = vld [vmem:[%s209 + $0x14] sm:$0xf]
      %v230 = vld [vmem:[%s209 + $0x18] sm:$0xf]
      %v231 = vld [vmem:[%s209 + $0x1c] sm:$0xf]
      %v232 = vld [vmem:[%s1] sm:$0xf]
      %v233 = vld [vmem:[%s1 + $0x4] sm:$0xf]
      %v234 = vld [vmem:[%s1 + $0x8] sm:$0xf]
      %v235 = vld [vmem:[%s1 + $0xc] sm:$0xf]
      %v236 = vld [vmem:[%s1 + $0x10] sm:$0xf]
      %v237 = vld [vmem:[%s1 + $0x14] sm:$0xf]
      %v238 = vld [vmem:[%s1 + $0x18] sm:$0xf]
      %v239 = vld [vmem:[%s1 + $0x1c] sm:$0xf]
      %v240 = vld [vmem:[%s1 + $0x20] sm:$0xf]
      %v241 = vld [vmem:[%s1 + $0x24] sm:$0xf]
      %v242 = vld [vmem:[%s1 + $0x28] sm:$0xf]
      %v243 = vld [vmem:[%s1 + $0x2c] sm:$0xf]
      %v244 = vld [vmem:[%s1 + $0x30] sm:$0xf]
      %v245 = vld [vmem:[%s1 + $0x34] sm:$0xf]
      %v246 = vld [vmem:[%s1 + $0x38] sm:$0xf]
      %v247 = vld [vmem:[%s1 + $0x3c] sm:$0xf]
      %v248 = vld [vmem:[%s2] sm:$0x1]
      %v250 = vlaneseq
      %v251 = vshrl.u32 %v250, 7
      %v252 = vsub.s32 0, %v251
      %v253 = vrot.slane %v248, %v252
      %v263 = vunpack.c.l.b16 %v224
      %v264 = vunpack.c.l.b16 %v225
      %v265 = vunpack.c.l.b16 %v226
      %v266 = vunpack.c.l.b16 %v227
      %v267 = vunpack.c.l.b16 %v228
      %v268 = vunpack.c.l.b16 %v229
      %v269 = vunpack.c.l.b16 %v230
      %v270 = vunpack.c.l.b16 %v231
      %v271 = vpack.c.b16 %v264, %v263
      %v272 = vpack.c.b16 %v266, %v265
      %v273 = vpack.c.b16 %v268, %v267
      %v274 = vpack.c.b16 %v270, %v269
      %v295 = vunpack.c.l.b16 %v232
      %v296 = vunpack.c.l.b16 %v233
      %v297 = vunpack.c.l.b16 %v234
      %v298 = vunpack.c.l.b16 %v235
      %v299 = vunpack.c.l.b16 %v236
      %v300 = vunpack.c.l.b16 %v237
      %v301 = vunpack.c.l.b16 %v238
      %v302 = vunpack.c.l.b16 %v239
      %v303 = vunpack.c.l.b16 %v240
      %v304 = vunpack.c.l.b16 %v241
      %v305 = vunpack.c.l.b16 %v242
      %v306 = vunpack.c.l.b16 %v243
      %v307 = vunpack.c.l.b16 %v244
      %v308 = vunpack.c.l.b16 %v245
      %v309 = vunpack.c.l.b16 %v246
      %v310 = vunpack.c.l.b16 %v247
      %v311 = vpack.c.b16 %v296, %v295
      %v312 = vpack.c.b16 %v298, %v297
      %v313 = vpack.c.b16 %v300, %v299
      %v314 = vpack.c.b16 %v302, %v301
      %v315 = vpack.c.b16 %v304, %v303
      %v316 = vpack.c.b16 %v306, %v305
      %v317 = vpack.c.b16 %v308, %v307
      %v318 = vpack.c.b16 %v310, %v309
      %327 = vmatprep.subr.bf16.mxu0 0
      %328 = vmatpush1.bf16.msra.mxu0 %v311
      %329 = vmatprep.subr.bf16.mxu0 0
      %330 = vmatpush1.bf16.msra.mxu0 %v312
      %331 = vmatprep.subr.bf16.mxu0 0
      %332 = vmatpush1.bf16.msra.mxu0 %v313
      %333 = vmatprep.subr.bf16.mxu0 0
      %334 = vmatpush1.bf16.msra.mxu0 %v314
      %335 = vmatprep.subr.bf16.mxu0 0
      %336 = vmatpush1.bf16.msra.mxu0 %v315
      %337 = vmatprep.subr.bf16.mxu0 0
      %338 = vmatpush1.bf16.msra.mxu0 %v316
      %339 = vmatprep.subr.bf16.mxu0 0
      %340 = vmatpush1.bf16.msra.mxu0 %v317
      %341 = vmatprep.subr.bf16.mxu0 0
      %342 = vmatpush1.bf16.msra.mxu0 %v318
      %343 = vmatprep.subr.bf16.mxu0 0
      %344 = vmatpush1.bf16.msra.mxu0 0
      %345 = vmatprep.subr.bf16.mxu0 0
      %346 = vmatpush1.bf16.msra.mxu0 0
      %347 = vmatprep.subr.bf16.mxu0 0
      %348 = vmatpush1.bf16.msra.mxu0 0
      %349 = vmatprep.subr.bf16.mxu0 0
      %350 = vmatpush1.bf16.msra.mxu0 0
      %351 = vmatprep.subr.bf16.mxu0 0
      %352 = vmatpush1.bf16.msra.mxu0 0
      %353 = vmatprep.subr.bf16.mxu0 0
      %354 = vmatpush1.bf16.msra.mxu0 0
      %355 = vmatprep.subr.bf16.mxu0 0
      %356 = vmatpush1.bf16.msra.mxu0 0
      %357 = vmatprep.subr.bf16.mxu0 0
      %358 = vmatpush1.bf16.msra.mxu0 0
      %359 = vmatprep.mubr.bf16.mxu0 0
      %360 = vmatmul.mubr.bf16.gmra.mrb[0].mxu0 %v271
      %v361 = vpop.f32.mrb[0].mxu0
      %v362 = vadd.f32 %v253, %v361
      %v363 = vpop.f32.mrb[0].mxu0
      %v364 = vpop.f32.mrb[0].mxu0
      %v365 = vadd.f32 %v253, %v364
      %v366 = vpop.f32.mrb[0].mxu0
      %367 = vmatprep.mubr.bf16.mxu0 0
      %368 = vmatmul.mubr.bf16.gmra.mrb[0].mxu0 %v272
      %v369 = vpop.f32.mrb[0].mxu0
      %v370 = vadd.f32 %v253, %v369
      %v371 = vpop.f32.mrb[0].mxu0
      %v372 = vpop.f32.mrb[0].mxu0
      %v373 = vadd.f32 %v253, %v372
      %v374 = vpop.f32.mrb[0].mxu0
      %375 = vmatprep.mubr.bf16.mxu0 0
      %376 = vmatmul.mubr.bf16.gmra.mrb[0].mxu0 %v273
      %v377 = vpop.f32.mrb[0].mxu0
      %v378 = vadd.f32 %v253, %v377
      %v379 = vpop.f32.mrb[0].mxu0
      %v380 = vpop.f32.mrb[0].mxu0
      %v381 = vadd.f32 %v253, %v380
      %v382 = vpop.f32.mrb[0].mxu0
      %383 = vmatprep.mubr.bf16.mxu0 0
      %384 = vmatmul.mubr.bf16.gmra.mrb[0].mxu0 %v274
      %v385 = vpop.f32.mrb[0].mxu0
      %v386 = vadd.f32 %v253, %v385
      %v387 = vpop.f32.mrb[0].mxu0
      %v388 = vpop.f32.mrb[0].mxu0
      %v389 = vadd.f32 %v253, %v388
      %v390 = vpop.f32.mrb[0].mxu0
      %391 = vdwg.mxu0
      %v392 = vsub.f32 0.0, %v362
      %v393 = vsub.f32 0.0, %v365
      %v394 = vsub.f32 0.0, %v370
      %v395 = vsub.f32 0.0, %v373
      %v396 = vsub.f32 0.0, %v378
      %v397 = vsub.f32 0.0, %v381
      %v398 = vsub.f32 0.0, %v386
      %v399 = vsub.f32 0.0, %v389
      %v400 = vmul.f32 %v392, 1.442695
      %v401 = vpow.pop %v400
      %v402 = vmul.f32 %v393, 1.442695
      %v403 = vpow.pop %v402
      %v404 = vmul.f32 %v394, 1.442695
      %v405 = vpow.pop %v404
      %v406 = vmul.f32 %v395, 1.442695
      %v407 = vpow.pop %v406
      %v408 = vmul.f32 %v396, 1.442695
      %v409 = vpow.pop %v408
      %v410 = vmul.f32 %v397, 1.442695
      %v411 = vpow.pop %v410
      %v412 = vmul.f32 %v398, 1.442695
      %v413 = vpow.pop %v412
      %v414 = vmul.f32 %v399, 1.442695
      %v415 = vpow.pop %v414
      %v416 = vadd.f32 %v401, 1.0
      %v417 = vadd.f32 %v403, 1.0
      %v418 = vadd.f32 %v405, 1.0
      %v419 = vadd.f32 %v407, 1.0
      %v420 = vadd.f32 %v409, 1.0
      %v421 = vadd.f32 %v411, 1.0
      %v422 = vadd.f32 %v413, 1.0
      %v423 = vadd.f32 %v415, 1.0
      %v424 = vrcp.pop %v416
      %v425 = vrcp.pop %v417
      %v426 = vrcp.pop %v418
      %v427 = vrcp.pop %v419
      %v428 = vrcp.pop %v420
      %v429 = vrcp.pop %v421
      %v430 = vrcp.pop %v422
      %v431 = vrcp.pop %v423
      %v432 = vmul.f32 %v362, %v424
      %v433 = vmul.f32 %v365, %v425
      %v434 = vmul.f32 %v370, %v426
      %v435 = vmul.f32 %v373, %v427
      %v436 = vmul.f32 %v378, %v428
      %v437 = vmul.f32 %v381, %v429
      %v438 = vmul.f32 %v386, %v430
      %v439 = vmul.f32 %v389, %v431
      %v440 = vld [vmem:[%s215] sm:$0xff]
      %v441 = vld [vmem:[%s215 + $0x8] sm:$0xff]
      %v442 = vld [vmem:[%s215 + $0x10] sm:$0xff]
      %v443 = vld [vmem:[%s215 + $0x18] sm:$0xff]
      %v444 = vld [vmem:[%s215 + $0x20] sm:$0xff]
      %v445 = vld [vmem:[%s215 + $0x28] sm:$0xff]
      %v446 = vld [vmem:[%s215 + $0x30] sm:$0xff]
      %v447 = vld [vmem:[%s215 + $0x38] sm:$0xff]
      %v448 = vadd.f32 %v440, %v432
      %v449 = vadd.f32 %v441, %v433
      %v450 = vadd.f32 %v442, %v434
      %v451 = vadd.f32 %v443, %v435
      %v452 = vadd.f32 %v444, %v436
      %v453 = vadd.f32 %v445, %v437
      %v454 = vadd.f32 %v446, %v438
      %v455 = vadd.f32 %v447, %v439
      %456 = vst [vmem:[%s221] sm:$0xff] %v448
      %457 = vst [vmem:[%s221 + $0x8] sm:$0xff] %v449
      %458 = vst [vmem:[%s221 + $0x10] sm:$0xff] %v450
      %459 = vst [vmem:[%s221 + $0x18] sm:$0xff] %v451
      %460 = vst [vmem:[%s221 + $0x20] sm:$0xff] %v452
      %461 = vst [vmem:[%s221 + $0x28] sm:$0xff] %v453
      %462 = vst [vmem:[%s221 + $0x30] sm:$0xff] %v454
      %463 = vst [vmem:[%s221 + $0x38] sm:$0xff] %v455
      %s464 = smul.u32 8, %s15
      %p465 = scmp.lt.s32.totalorder %s464, 15
      %s466 = scalar_select %p465, %s464, 15
      %s467 = smul.addr %s466, 8
      %s468 = scalar_lea.vmem %s4, %s467
      // Predicated region
      $region37: #{mcam_forward.5} parent=35 // pred_check
        %p469 = pneg %p127
      $region38: #{mcam_forward.5} parent=35 // pred_check_branch
        %471 = sbr.rel (%p469) target = $region40
      $region39: #{mcam_forward.5} parent=35 // pred_region
        %s472 = smul.u32 8, %s15
      $region40: #{mcam_forward.5} parent=35 // pred_fallthru
        _
    $region36: #{mcam_forward.5} parent=5 // pred_fallthru
      _
    %p473 = scmp.le.s32.totalorder 2, %s10
    // Predicated region
    $region41: #{mcam_forward.5} parent=5 // pred_check
      %p474 = pneg %p473
    $region42: #{mcam_forward.5} parent=5 // pred_check_branch
      %476 = sbr.rel (%p474) target = $region44
    $region43: #{mcam_forward.5} parent=5 // pred_region
      %s477 = ssub.s32 %s10, 2
      // Predicated region
      $region45: #{mcam_forward.5} parent=43 // pred_check
        %p478 = pneg %p133
      $region46: #{mcam_forward.5} parent=43 // pred_check_branch
        %480 = sbr.rel (%p478) target = $region48
      $region47: #{mcam_forward.5} parent=43 // pred_region
        %s481 = smul.u32 8, %s16
        %p482 = scmp.lt.s32.totalorder %s481, 15
        %s483 = scalar_select %p482, %s481, 15
        %s484 = smul.addr %s483, 8
        %s485 = scalar_lea.vmem %s4, %s484
      $region48: #{mcam_forward.5} parent=43 // pred_fallthru
        _
    $region44: #{mcam_forward.5} parent=5 // pred_fallthru
      _
  $region6: #{mcam_forward.5} parent=0 // loop_footer
    %s14 = sadd.s32 1, %s10
  $region7: #{mcam_forward.5} parent=0 // loop_footer_branch
    %9 = sbr.rel target = $region3
  $region8: #{mcam_forward.5} parent=0 // loop_exit
    _

// kernel: mcam_forward.3
$region0: #{mcam_forward.3}
  #allocation0 [shape = 'u32[]', space=smem, size = 0x4, offset = 0x4, fixed_abs, tag = 'smem constant byte address 0x4 - core index']
  #allocation1 [shape = 'u32[144,128]{1,0:T(1,128)}', space=vmem, size = 0x12000, scoped, tag = 'internal scratch']
  %s0 = inlined_call_operand.vmem [shape: bf16[128,8], index: 0, kind: input, shape index: {}]
  %s1 = inlined_call_operand.vmem [shape: bf16[128,16], index: 1, kind: input, shape index: {}]
  %s2 = inlined_call_operand.vmem [shape: bf16[128,144], index: 2, kind: input, shape index: {}]
  %s3 = inlined_call_operand.vmem [shape: bf16[128,16], index: 3, kind: input, shape index: {}]
  %s4 = inlined_call_operand.vmem [shape: bf16[8,128], index: 4, kind: input, shape index: {}]
  %s5 = inlined_call_operand.vmem [shape: bf16[16,128], index: 5, kind: input, shape index: {}]
  %s6 = inlined_call_operand.vmem [shape: bf16[144,128], index: 6, kind: input, shape index: {}]
  %s7 = inlined_call_operand.vmem [shape: bf16[16,128], index: 7, kind: input, shape index: {}]
  %s8 = inlined_call_operand.vmem [shape: f32[1,128], index: 8, kind: input, shape index: {}]
  %s9 = inlined_call_operand.vmem [shape: f32[128,128], index: 9, kind: output, shape index: {}]
  %s10 = sld [smem:[#allocation0]]
  $region69: #{mcam_forward.3} parent=0
    _
  %s12 = ssub.s32 1, %s10
  %s13 = scalar_select 0, %s12, %s10
  loop: start=0, step=1, limit=4
  $region2: #{mcam_forward.3} parent=0 // loop_pre_header
    _
  $region3: #{mcam_forward.3} parent=0 // loop_header
    %s15 = sphi 0, %s19
    %p16 = scmp.ge.s32.totalorder %s15, 4
    %s25 = sphi 0, %s27
    %s28 = sphi 0, %s25
    %s29 = sphi 0, %s28
    %s45 = sphi 0, %s29
    %s51 = sphi 0, %s53
    %s54 = sphi 0, %s51
    %s55 = sphi 0, %s54
    %s71 = sphi 0, %s55
    %s77 = sphi 0, %s79
    %s80 = sphi 0, %s77
    %s81 = sphi 0, %s80
    %s97 = sphi 0, %s81
    %s103 = sphi 0, %s105
    %s106 = sphi 0, %s103
    %s107 = sphi 0, %s106
    %s123 = sphi 0, %s107
    %s127 = sphi 0, %s127
    %s129 = sphi 0, %s127
    %s130 = sphi 0, %s129
    %s144 = sphi 0, %s130
    %s148 = sphi 0, %s148
    %s150 = sphi 0, %s148
    %s151 = sphi 0, %s150
    %s165 = sphi 0, %s151
    %s169 = sphi 0, %s169
    %s171 = sphi 0, %s169
    %s172 = sphi 0, %s171
    %s186 = sphi 0, %s172
    %s190 = sphi 0, %s190
    %s192 = sphi 0, %s190
    %s193 = sphi 0, %s192
    %s207 = sphi 0, %s193
    %s211 = sphi 0, %s211
    %s213 = sphi 0, %s211
    %s214 = sphi 0, %s213
    %s228 = sphi 0, %s214
    %s234 = sphi 0, %s236
    %s237 = sphi 0, %s234
    %s238 = sphi 0, %s237
    %s254 = sphi 0, %s238
  $region4: #{mcam_forward.3} parent=0 // loop_header_branch
    %18 = sbr.rel (%p16) target = $region8
  $region5: #{mcam_forward.3} parent=0 // loop_body
    %s20 = ssub.s32 %s15, 1
    %s21 = ssub.s32 %s15, 2
    %s22 = sadd.s32 %s15, 1
    %s23 = ssub.s32 %s15, %s22
    %p24 = scmp.eq.s32.totalorder %s23, 0
    %s26 = sadd.s32 %s25, 1
    %s27 = scalar_select %p24, %s25, %s26
    %p30 = pneg %p24
    %p31 = scmp.eq.s32.totalorder %s15, 1
    %p32 = por %p30, %p31
    %p33 = scmp.ne.s32.totalorder %s25, %s28
    %p34 = scmp.eq.s32.totalorder %s15, 0
    %p35 = por %p33, %p34
    %p36 = scmp.ne.s32.totalorder %s25, %s28
    %p37 = scmp.eq.s32.totalorder %s20, 1
    %p38 = por %p36, %p37
    %p39 = scmp.ne.s32.totalorder %s28, %s29
    %p40 = scmp.eq.s32.totalorder %s20, 0
    %p41 = por %p39, %p40
    %p42 = scmp.ne.s32.totalorder %s28, %s29
    %p43 = scmp.eq.s32.totalorder %s21, 1
    %p44 = por %p42, %p43
    %p46 = scmp.ne.s32.totalorder %s29, %s45
    %p47 = scmp.eq.s32.totalorder %s21, 0
    %p48 = por %p46, %p47
    %s49 = ssub.s32 %s15, %s22
    %p50 = scmp.eq.s32.totalorder %s49, 0
    %s52 = sadd.s32 %s51, 1
    %s53 = scalar_select %p50, %s51, %s52
    %p56 = pneg %p50
    %p57 = scmp.eq.s32.totalorder %s15, 1
    %p58 = por %p56, %p57
    %p59 = scmp.ne.s32.totalorder %s51, %s54
    %p60 = scmp.eq.s32.totalorder %s15, 0
    %p61 = por %p59, %p60
    %p62 = scmp.ne.s32.totalorder %s51, %s54
    %p63 = scmp.eq.s32.totalorder %s20, 1
    %p64 = por %p62, %p63
    %p65 = scmp.ne.s32.totalorder %s54, %s55
    %p66 = scmp.eq.s32.totalorder %s20, 0
    %p67 = por %p65, %p66
    %p68 = scmp.ne.s32.totalorder %s54, %s55
    %p69 = scmp.eq.s32.totalorder %s21, 1
    %p70 = por %p68, %p69
    %p72 = scmp.ne.s32.totalorder %s55, %s71
    %p73 = scmp.eq.s32.totalorder %s21, 0
    %p74 = por %p72, %p73
    %s75 = ssub.s32 %s15, %s22
    %p76 = scmp.eq.s32.totalorder %s75, 0
    %s78 = sadd.s32 %s77, 1
    %s79 = scalar_select %p76, %s77, %s78
    %p82 = pneg %p76
    %p83 = scmp.eq.s32.totalorder %s15, 1
    %p84 = por %p82, %p83
    %p85 = scmp.ne.s32.totalorder %s77, %s80
    %p86 = scmp.eq.s32.totalorder %s15, 0
    %p87 = por %p85, %p86
    %p88 = scmp.ne.s32.totalorder %s77, %s80
    %p89 = scmp.eq.s32.totalorder %s20, 1
    %p90 = por %p88, %p89
    %p91 = scmp.ne.s32.totalorder %s80, %s81
    %p92 = scmp.eq.s32.totalorder %s20, 0
    %p93 = por %p91, %p92
    %p94 = scmp.ne.s32.totalorder %s80, %s81
    %p95 = scmp.eq.s32.totalorder %s21, 1
    %p96 = por %p94, %p95
    %p98 = scmp.ne.s32.totalorder %s81, %s97
    %p99 = scmp.eq.s32.totalorder %s21, 0
    %p100 = por %p98, %p99
    %s101 = ssub.s32 %s15, %s22
    %p102 = scmp.eq.s32.totalorder %s101, 0
    %s104 = sadd.s32 %s103, 1
    %s105 = scalar_select %p102, %s103, %s104
    %p108 = pneg %p102
    %p109 = scmp.eq.s32.totalorder %s15, 1
    %p110 = por %p108, %p109
    %p111 = scmp.ne.s32.totalorder %s103, %s106
    %p112 = scmp.eq.s32.totalorder %s15, 0
    %p113 = por %p111, %p112
    %p114 = scmp.ne.s32.totalorder %s103, %s106
    %p115 = scmp.eq.s32.totalorder %s20, 1
    %p116 = por %p114, %p115
    %p117 = scmp.ne.s32.totalorder %s106, %s107
    %p118 = scmp.eq.s32.totalorder %s20, 0
    %p119 = por %p117, %p118
    %p120 = scmp.ne.s32.totalorder %s106, %s107
    %p121 = scmp.eq.s32.totalorder %s21, 1
    %p122 = por %p120, %p121
    %p124 = scmp.ne.s32.totalorder %s107, %s123
    %p125 = scmp.eq.s32.totalorder %s21, 0
    %p126 = por %p124, %p125
    %s128 = sadd.s32 %s127, 1
    %p131 = scmp.eq.s32.totalorder %s15, 1
    %p132 = scmp.ne.s32.totalorder %s127, %s129
    %p133 = scmp.eq.s32.totalorder %s15, 0
    %p134 = por %p132, %p133
    %p135 = scmp.ne.s32.totalorder %s127, %s129
    %p136 = scmp.eq.s32.totalorder %s20, 1
    %p137 = por %p135, %p136
    %p138 = scmp.ne.s32.totalorder %s129, %s130
    %p139 = scmp.eq.s32.totalorder %s20, 0
    %p140 = por %p138, %p139
    %p141 = scmp.ne.s32.totalorder %s129, %s130
    %p142 = scmp.eq.s32.totalorder %s21, 1
    %p143 = por %p141, %p142
    %p145 = scmp.ne.s32.totalorder %s130, %s144
    %p146 = scmp.eq.s32.totalorder %s21, 0
    %p147 = por %p145, %p146
    %s149 = sadd.s32 %s148, 1
    %p152 = scmp.eq.s32.totalorder %s15, 1
    %p153 = scmp.ne.s32.totalorder %s148, %s150
    %p154 = scmp.eq.s32.totalorder %s15, 0
    %p155 = por %p153, %p154
    %p156 = scmp.ne.s32.totalorder %s148, %s150
    %p157 = scmp.eq.s32.totalorder %s20, 1
    %p158 = por %p156, %p157
    %p159 = scmp.ne.s32.totalorder %s150, %s151
    %p160 = scmp.eq.s32.totalorder %s20, 0
    %p161 = por %p159, %p160
    %p162 = scmp.ne.s32.totalorder %s150, %s151
    %p163 = scmp.eq.s32.totalorder %s21, 1
    %p164 = por %p162, %p163
    %p166 = scmp.ne.s32.totalorder %s151, %s165
    %p167 = scmp.eq.s32.totalorder %s21, 0
    %p168 = por %p166, %p167
    %s170 = sadd.s32 %s169, 1
    %p173 = scmp.eq.s32.totalorder %s15, 1
    %p174 = scmp.ne.s32.totalorder %s169, %s171
    %p175 = scmp.eq.s32.totalorder %s15, 0
    %p176 = por %p174, %p175
    %p177 = scmp.ne.s32.totalorder %s169, %s171
    %p178 = scmp.eq.s32.totalorder %s20, 1
    %p179 = por %p177, %p178
    %p180 = scmp.ne.s32.totalorder %s171, %s172
    %p181 = scmp.eq.s32.totalorder %s20, 0
    %p182 = por %p180, %p181
    %p183 = scmp.ne.s32.totalorder %s171, %s172
    %p184 = scmp.eq.s32.totalorder %s21, 1
    %p185 = por %p183, %p184
    %p187 = scmp.ne.s32.totalorder %s172, %s186
    %p188 = scmp.eq.s32.totalorder %s21, 0
    %p189 = por %p187, %p188
    %s191 = sadd.s32 %s190, 1
    %p194 = scmp.eq.s32.totalorder %s15, 1
    %p195 = scmp.ne.s32.totalorder %s190, %s192
    %p196 = scmp.eq.s32.totalorder %s15, 0
    %p197 = por %p195, %p196
    %p198 = scmp.ne.s32.totalorder %s190, %s192
    %p199 = scmp.eq.s32.totalorder %s20, 1
    %p200 = por %p198, %p199
    %p201 = scmp.ne.s32.totalorder %s192, %s193
    %p202 = scmp.eq.s32.totalorder %s20, 0
    %p203 = por %p201, %p202
    %p204 = scmp.ne.s32.totalorder %s192, %s193
    %p205 = scmp.eq.s32.totalorder %s21, 1
    %p206 = por %p204, %p205
    %p208 = scmp.ne.s32.totalorder %s193, %s207
    %p209 = scmp.eq.s32.totalorder %s21, 0
    %p210 = por %p208, %p209
    %s212 = sadd.s32 %s211, 1
    %p215 = scmp.eq.s32.totalorder %s15, 1
    %p216 = scmp.ne.s32.totalorder %s211, %s213
    %p217 = scmp.eq.s32.totalorder %s15, 0
    %p218 = por %p216, %p217
    %p219 = scmp.ne.s32.totalorder %s211, %s213
    %p220 = scmp.eq.s32.totalorder %s20, 1
    %p221 = por %p219, %p220
    %p222 = scmp.ne.s32.totalorder %s213, %s214
    %p223 = scmp.eq.s32.totalorder %s20, 0
    %p224 = por %p222, %p223
    %p225 = scmp.ne.s32.totalorder %s213, %s214
    %p226 = scmp.eq.s32.totalorder %s21, 1
    %p227 = por %p225, %p226
    %p229 = scmp.ne.s32.totalorder %s214, %s228
    %p230 = scmp.eq.s32.totalorder %s21, 0
    %p231 = por %p229, %p230
    %s232 = ssub.s32 %s15, %s22
    %p233 = scmp.eq.s32.totalorder %s232, 0
    %s235 = sadd.s32 %s234, 1
    %s236 = scalar_select %p233, %s234, %s235
    %p239 = pneg %p233
    %p240 = scmp.eq.s32.totalorder %s15, 1
    %p241 = por %p239, %p240
    %p242 = scmp.ne.s32.totalorder %s234, %s237
    %p243 = scmp.eq.s32.totalorder %s15, 0
    %p244 = por %p242, %p243
    %p245 = scmp.ne.s32.totalorder %s234, %s237
    %p246 = scmp.eq.s32.totalorder %s20, 1
    %p247 = por %p245, %p246
    %p248 = scmp.ne.s32.totalorder %s237, %s238
    %p249 = scmp.eq.s32.totalorder %s20, 0
    %p250 = por %p248, %p249
    %p251 = scmp.ne.s32.totalorder %s237, %s238
    %p252 = scmp.eq.s32.totalorder %s21, 1
    %p253 = por %p251, %p252
    %p255 = scmp.ne.s32.totalorder %s238, %s254
    %p256 = scmp.eq.s32.totalorder %s21, 0
    %p257 = por %p255, %p256
    %p258 = scmp.le.s32.totalorder 1, %s15
    %p259 = scmp.lt.s32.totalorder %s15, 3
    %p260 = pnand %p258, %p259
    %p261 = pneg %p260
    // Predicated region
    $region9: #{mcam_forward.3} parent=5 // pred_check
      _
    $region10: #{mcam_forward.3} parent=5 // pred_check_branch
      %263 = sbr.rel (%p260) target = $region12
    $region11: #{mcam_forward.3} parent=5 // pred_region
      %s264 = ssub.s32 %s15, 1
      // Predicated region
      $region13: #{mcam_forward.3} parent=11 // pred_check
        %p265 = pneg %p140
      $region14: #{mcam_forward.3} parent=11 // pred_check_branch
        %267 = sbr.rel (%p265) target = $region16
      $region15: #{mcam_forward.3} parent=11 // pred_region
        _
      $region16: #{mcam_forward.3} parent=11 // pred_fallthru
        _
      // Predicated region
      $region17: #{mcam_forward.3} parent=11 // pred_check
        %p268 = pneg %p161
      $region18: #{mcam_forward.3} parent=11 // pred_check_branch
        %270 = sbr.rel (%p268) target = $region20
      $region19: #{mcam_forward.3} parent=11 // pred_region
        _
      $region20: #{mcam_forward.3} parent=11 // pred_fallthru
        _
      // Predicated region
      $region21: #{mcam_forward.3} parent=11 // pred_check
        %p271 = pneg %p182
      $region22: #{mcam_forward.3} parent=11 // pred_check_branch
        %273 = sbr.rel (%p271) target = $region24
      $region23: #{mcam_forward.3} parent=11 // pred_region
        _
      $region24: #{mcam_forward.3} parent=11 // pred_fallthru
        _
      // Predicated region
      $region25: #{mcam_forward.3} parent=11 // pred_check
        %p274 = pneg %p203
      $region26: #{mcam_forward.3} parent=11 // pred_check_branch
        %276 = sbr.rel (%p274) target = $region28
      $region27: #{mcam_forward.3} parent=11 // pred_region
        _
      $region28: #{mcam_forward.3} parent=11 // pred_fallthru
        _
      // Predicated region
      $region29: #{mcam_forward.3} parent=11 // pred_check
        %p277 = pneg %p224
      $region30: #{mcam_forward.3} parent=11 // pred_check_branch
        %279 = sbr.rel (%p277) target = $region32
      $region31: #{mcam_forward.3} parent=11 // pred_region
        _
      $region32: #{mcam_forward.3} parent=11 // pred_fallthru
        _
    $region12: #{mcam_forward.3} parent=5 // pred_fallthru
      _
    %p280 = scmp.lt.s32.totalorder %s15, 2
    // Predicated region
    $region33: #{mcam_forward.3} parent=5 // pred_check
      %p281 = pneg %p280
    $region34: #{mcam_forward.3} parent=5 // pred_check_branch
      %283 = sbr.rel (%p281) target = $region36
    $region35: #{mcam_forward.3} parent=5 // pred_region
      // Predicated region
      $region37: #{mcam_forward.3} parent=35 // pred_check
        %p284 = pneg %p35
      $region38: #{mcam_forward.3} parent=35 // pred_check_branch
        %286 = sbr.rel (%p284) target = $region40
      $region39: #{mcam_forward.3} parent=35 // pred_region
        %s287 = smul.u32 8, %s15
        %p288 = scmp.lt.s32.totalorder %s287, 15
        %s289 = scalar_select %p288, %s287, 15
        %s290 = smul.addr %s289, 4
        %s291 = scalar_lea.vmem %s0, %s290
        %s292 = smul.u32 8, %s15
      $region40: #{mcam_forward.3} parent=35 // pred_fallthru
        _
      // Predicated region
      $region41: #{mcam_forward.3} parent=35 // pred_check
        %p293 = pneg %p61
      $region42: #{mcam_forward.3} parent=35 // pred_check_branch
        %295 = sbr.rel (%p293) target = $region44
      $region43: #{mcam_forward.3} parent=35 // pred_region
        %s296 = smul.u32 8, %s15
        %p297 = scmp.lt.s32.totalorder %s296, 15
        %s298 = scalar_select %p297, %s296, 15
        %s299 = smul.addr %s298, 4
        %s300 = scalar_lea.vmem %s1, %s299
        %s301 = smul.u32 8, %s15
      $region44: #{mcam_forward.3} parent=35 // pred_fallthru
        _
      // Predicated region
      $region45: #{mcam_forward.3} parent=35 // pred_check
        %p302 = pneg %p87
      $region46: #{mcam_forward.3} parent=35 // pred_check_branch
        %304 = sbr.rel (%p302) target = $region48
      $region47: #{mcam_forward.3} parent=35 // pred_region
        %s305 = smul.u32 8, %s15
        %p306 = scmp.lt.s32.totalorder %s305, 15
        %s307 = scalar_select %p306, %s305, 15
        %s308 = smul.addr %s307, 2
        %s309 = smul.addr %s308, 4
        %s310 = scalar_lea.vmem %s2, %s309
        %s311 = smul.u32 8, %s15
      $region48: #{mcam_forward.3} parent=35 // pred_fallthru
        _
      // Predicated region
      $region49: #{mcam_forward.3} parent=35 // pred_check
        %p312 = pneg %p113
      $region50: #{mcam_forward.3} parent=35 // pred_check_branch
        %314 = sbr.rel (%p312) target = $region52
      $region51: #{mcam_forward.3} parent=35 // pred_region
        %s315 = smul.u32 8, %s15
        %p316 = scmp.lt.s32.totalorder %s315, 15
        %s317 = scalar_select %p316, %s315, 15
        %s318 = smul.addr %s317, 4
        %s319 = scalar_lea.vmem %s3, %s318
        %s320 = smul.u32 8, %s15
      $region52: #{mcam_forward.3} parent=35 // pred_fallthru
        _
    $region36: #{mcam_forward.3} parent=5 // pred_fallthru
      _
    %p321 = scmp.le.s32.totalorder 1, %s15
    %p322 = scmp.lt.s32.totalorder %s15, 3
    %p323 = pnand %p321, %p322
    %p324 = pneg %p323
    // Predicated region
    $region53: #{mcam_forward.3} parent=5 // pred_check
      _
    $region54: #{mcam_forward.3} parent=5 // pred_check_branch
      %326 = sbr.rel (%p323) target = $region56
    $region55: #{mcam_forward.3} parent=5 // pred_region
      %s327 = ssub.s32 %s15, 1
      %s328 = smul.u32 8, %s20
      %p329 = scmp.lt.s32.totalorder %s328, 15
      %s330 = scalar_select %p329, %s328, 15
      %s331 = smul.addr %s330, 4
      %s332 = scalar_lea.vmem %s0, %s331
      %p333 = pneg %p41
      %p334 = pneg %p38
      %s335 = smul.u32 8, %s20
      %p336 = scmp.lt.s32.totalorder %s335, 15
      %s337 = scalar_select %p336, %s335, 15
      %s338 = smul.addr %s337, 4
      %s339 = scalar_lea.vmem %s1, %s338
      %p340 = pneg %p67
      %p341 = pneg %p64
      %s342 = smul.u32 8, %s20
      %p343 = scmp.lt.s32.totalorder %s342, 15
      %s344 = scalar_select %p343, %s342, 15
      %s345 = smul.addr %s344, 2
      %s346 = smul.addr %s345, 4
      %s347 = scalar_lea.vmem %s2, %s346
      %p348 = pneg %p93
      %p349 = pneg %p90
      %s350 = smul.u32 8, %s20
      %p351 = scmp.lt.s32.totalorder %s350, 15
      %s352 = scalar_select %p351, %s350, 15
      %s353 = smul.addr %s352, 4
      %s354 = scalar_lea.vmem %s3, %s353
      %p355 = pneg %p119
      %p356 = pneg %p116
      %p357 = pneg %p140
      %p358 = pneg %p137
      %p359 = pneg %p161
      %p360 = pneg %p158
      %p361 = pneg %p182
      %p362 = pneg %p179
      %p363 = pneg %p203
      %p364 = pneg %p200
      %p365 = pneg %p224
      %p366 = pneg %p221
      %p367 = pneg %p250
      %p368 = pneg %p247
      %s369 = smul.u32 8, %s20
      %p370 = scmp.lt.s32.totalorder %s369, 15
      %s371 = scalar_select %p370, %s369, 15
      %s372 = smul.addr %s371, 8
      %s373 = scalar_lea.vmem %s9, %s372
      %s374 = smul.u32 8, %s20
      %p375 = scmp.lt.s32.totalorder %s374, 15
      %s376 = scalar_select %p375, %s374, 15
      %s377 = smul.addr %s376, 4
      %s378 = scalar_lea.vmem %s0, %s377
      %s379 = smul.u32 8, %s20
      %s380 = smul.u32 8, %s20
      %p381 = scmp.lt.s32.totalorder %s380, 15
      %s382 = scalar_select %p381, %s380, 15
      %s383 = smul.addr %s382, 4
      %s384 = scalar_lea.vmem %s1, %s383
      %s385 = smul.u32 8, %s20
      %s386 = smul.u32 8, %s20
      %p387 = scmp.lt.s32.totalorder %s386, 15
      %s388 = scalar_select %p387, %s386, 15
      %s389 = smul.addr %s388, 2
      %s390 = smul.addr %s389, 4
      %s391 = scalar_lea.vmem %s2, %s390
      %s392 = smul.u32 8, %s20
      %s393 = smul.u32 8, %s20
      %p394 = scmp.lt.s32.totalorder %s393, 15
      %s395 = scalar_select %p394, %s393, 15
      %s396 = smul.addr %s395, 4
      %s397 = scalar_lea.vmem %s3, %s396
      %s398 = smul.u32 8, %s20
      %s399 = smul.u32 8, %s20
      %p400 = scmp.lt.s32.totalorder %s399, 15
      %s401 = scalar_select %p400, %s399, 15
      %s402 = smul.addr %s401, 8
      %s403 = scalar_lea.vmem %s9, %s402
      %s404 = smul.u32 8, %s20
      %v406 = vld [vmem:[%s378] sm:$0xf]
      %v407 = vld [vmem:[%s378 + $0x4] sm:$0xf]
      %v408 = vld [vmem:[%s378 + $0x8] sm:$0xf]
      %v409 = vld [vmem:[%s378 + $0xc] sm:$0xf]
      %v410 = vld [vmem:[%s378 + $0x10] sm:$0xf]
      %v411 = vld [vmem:[%s378 + $0x14] sm:$0xf]
      %v412 = vld [vmem:[%s378 + $0x18] sm:$0xf]
      %v413 = vld [vmem:[%s378 + $0x1c] sm:$0xf]
      %v414 = vld [vmem:[%s4] sm:$0xf]
      %v415 = vld [vmem:[%s384] sm:$0xf]
      %v416 = vld [vmem:[%s384 + $0x4] sm:$0xf]
      %v417 = vld [vmem:[%s384 + $0x8] sm:$0xf]
      %v418 = vld [vmem:[%s384 + $0xc] sm:$0xf]
      %v419 = vld [vmem:[%s384 + $0x10] sm:$0xf]
      %v420 = vld [vmem:[%s384 + $0x14] sm:$0xf]
      %v421 = vld [vmem:[%s384 + $0x18] sm:$0xf]
      %v422 = vld [vmem:[%s384 + $0x1c] sm:$0xf]
      %v423 = vld [vmem:[%s5] sm:$0xf]
      %v424 = vld [vmem:[%s5 + $0x4] sm:$0xf]
      %v433 = vunpack.c.l.b16 %v415
      %v434 = vunpack.c.l.b16 %v416
      %v435 = vunpack.c.l.b16 %v417
      %v436 = vunpack.c.l.b16 %v418
      %v437 = vunpack.c.l.b16 %v419
      %v438 = vunpack.c.l.b16 %v420
      %v439 = vunpack.c.l.b16 %v421
      %v440 = vunpack.c.l.b16 %v422
      %v441 = vpack.c.b16 %v434, %v433
      %v442 = vpack.c.b16 %v436, %v435
      %v443 = vpack.c.b16 %v438, %v437
      %v444 = vpack.c.b16 %v440, %v439
      %v447 = vunpack.c.l.b16 %v423
      %v448 = vunpack.c.l.b16 %v424
      %v449 = vpack.c.b16 %v448, %v447
      %vm451 = vcmask 130048
      %v453 = vsel %vm451, %v441, 0
      %v456 = vsel %vm451, %v442, 0
      %v459 = vsel %vm451, %v443, 0
      %v462 = vsel %vm451, %v444, 0
      %464 = vmatprep.subr.bf16.mxu0 0
      %465 = vmatpush1.bf16.msra.mxu0 %v449
      %466 = vmatprep.subr.bf16.mxu0 0
      %467 = vmatpush1.bf16.msra.mxu0 0
      %468 = vmatprep.subr.bf16.mxu0 0
      %469 = vmatpush1.bf16.msra.mxu0 0
      %470 = vmatprep.subr.bf16.mxu0 0
      %471 = vmatpush1.bf16.msra.mxu0 0
      %472 = vmatprep.subr.bf16.mxu0 0
      %473 = vmatpush1.bf16.msra.mxu0 0
      %474 = vmatprep.subr.bf16.mxu0 0
      %475 = vmatpush1.bf16.msra.mxu0 0
      %476 = vmatprep.subr.bf16.mxu0 0
      %477 = vmatpush1.bf16.msra.mxu0 0
      %478 = vmatprep.subr.bf16.mxu0 0
      %479 = vmatpush1.bf16.msra.mxu0 0
      %480 = vmatprep.subr.bf16.mxu0 0
      %481 = vmatpush1.bf16.msra.mxu0 0
      %482 = vmatprep.subr.bf16.mxu0 0
      %483 = vmatpush1.bf16.msra.mxu0 0
      %484 = vmatprep.subr.bf16.mxu0 0
      %485 = vmatpush1.bf16.msra.mxu0 0
      %486 = vmatprep.subr.bf16.mxu0 0
      %487 = vmatpush1.bf16.msra.mxu0 0
      %488 = vmatprep.subr.bf16.mxu0 0
      %489 = vmatpush1.bf16.msra.mxu0 0
      %490 = vmatprep.subr.bf16.mxu0 0
      %491 = vmatpush1.bf16.msra.mxu0 0
      %492 = vmatprep.subr.bf16.mxu0 0
      %493 = vmatpush1.bf16.msra.mxu0 0
      %494 = vmatprep.subr.bf16.mxu0 0
      %495 = vmatpush1.bf16.msra.mxu0 0
      %496 = vmatprep.mubr.bf16.mxu0 0
      %497 = vmatmul.mubr.bf16.gmra.mrb[0].mxu0 %v453
      %v498 = vpop.f32.mrb[0].mxu0
      %v499 = vadd.f32 0.0, %v498
      %v500 = vpop.f32.mrb[0].mxu0
      %v501 = vpop.f32.mrb[0].mxu0
      %v502 = vadd.f32 0.0, %v501
      %v503 = vpop.f32.mrb[0].mxu0
      %504 = vmatprep.mubr.bf16.mxu0 0
      %505 = vmatmul.mubr.bf16.gmra.mrb[0].mxu0 %v456
      %v506 = vpop.f32.mrb[0].mxu0
      %v507 = vadd.f32 0.0, %v506
      %v508 = vpop.f32.mrb[0].mxu0
      %v509 = vpop.f32.mrb[0].mxu0
      %v510 = vadd.f32 0.0, %v509
      %v511 = vpop.f32.mrb[0].mxu0
      %512 = vmatprep.mubr.bf16.mxu0 0
      %513 = vmatmul.mubr.bf16.gmra.mrb[0].mxu0 %v459
      %v514 = vpop.f32.mrb[0].mxu0
      %v515 = vadd.f32 0.0, %v514
      %v516 = vpop.f32.mrb[0].mxu0
      %v517 = vpop.f32.mrb[0].mxu0
      %v518 = vadd.f32 0.0, %v517
      %v519 = vpop.f32.mrb[0].mxu0
      %520 = vmatprep.mubr.bf16.mxu0 0
      %521 = vmatmul.mubr.bf16.gmra.mrb[0].mxu0 %v462
      %v522 = vpop.f32.mrb[0].mxu0
      %v523 = vadd.f32 0.0, %v522
      %v524 = vpop.f32.mrb[0].mxu0
      %v525 = vpop.f32.mrb[0].mxu0
      %v526 = vadd.f32 0.0, %v525
      %v527 = vpop.f32.mrb[0].mxu0
      %528 = vdwg.mxu0
      %v537 = vunpack.c.l.b16 %v406
      %v538 = vunpack.c.l.b16 %v407
      %v539 = vunpack.c.l.b16 %v408
      %v540 = vunpack.c.l.b16 %v409
      %v541 = vunpack.c.l.b16 %v410
      %v542 = vunpack.c.l.b16 %v411
      %v543 = vunpack.c.l.b16 %v412
      %v544 = vunpack.c.l.b16 %v413
      %v545 = vpack.c.b16 %v538, %v537
      %v546 = vpack.c.b16 %v540, %v539
      %v547 = vpack.c.b16 %v542, %v541
      %v548 = vpack.c.b16 %v544, %v543
      %vm549 = vcmask 64512
      %v551 = vsel %vm549, %v545, 0
      %v554 = vsel %vm549, %v546, 0
      %v557 = vsel %vm549, %v547, 0
      %v560 = vsel %vm549, %v548, 0
      %vm562 = vcmask 1043456
      %v564 = vsel %vm562, %v414, 0
      %566 = vmatprep.subr.bf16.mxu0 0
      %567 = vmatpush1.bf16.msra.mxu0 %v564
      %568 = vmatprep.subr.bf16.mxu0 0
      %569 = vmatpush1.bf16.msra.mxu0 0
      %570 = vmatprep.subr.bf16.mxu0 0
      %571 = vmatpush1.bf16.msra.mxu0 0
      %572 = vmatprep.subr.bf16.mxu0 0
      %573 = vmatpush1.bf16.msra.mxu0 0
      %574 = vmatprep.subr.bf16.mxu0 0
      %575 = vmatpush1.bf16.msra.mxu0 0
      %576 = vmatprep.subr.bf16.mxu0 0
      %577 = vmatpush1.bf16.msra.mxu0 0
      %578 = vmatprep.subr.bf16.mxu0 0
      %579 = vmatpush1.bf16.msra.mxu0 0
      %580 = vmatprep.subr.bf16.mxu0 0
      %581 = vmatpush1.bf16.msra.mxu0 0
      %582 = vmatprep.subr.bf16.mxu0 0
      %583 = vmatpush1.bf16.msra.mxu0 0
      %584 = vmatprep.subr.bf16.mxu0 0
      %585 = vmatpush1.bf16.msra.mxu0 0
      %586 = vmatprep.subr.bf16.mxu0 0
      %587 = vmatpush1.bf16.msra.mxu0 0
      %588 = vmatprep.subr.bf16.mxu0 0
      %589 = vmatpush1.bf16.msra.mxu0 0
      %590 = vmatprep.subr.bf16.mxu0 0
      %591 = vmatpush1.bf16.msra.mxu0 0
      %592 = vmatprep.subr.bf16.mxu0 0
      %593 = vmatpush1.bf16.msra.mxu0 0
      %594 = vmatprep.subr.bf16.mxu0 0
      %595 = vmatpush1.bf16.msra.mxu0 0
      %596 = vmatprep.subr.bf16.mxu0 0
      %597 = vmatpush1.bf16.msra.mxu0 0
      %598 = vmatprep.mubr.bf16.mxu0 0
      %599 = vmatmul.mubr.bf16.gmra.mrb[0].mxu0 %v551
      %v600 = vpop.f32.mrb[0].mxu0
      %v601 = vadd.f32 %v499, %v600
      %v602 = vpop.f32.mrb[0].mxu0
      %v603 = vpop.f32.mrb[0].mxu0
      %v604 = vadd.f32 %v502, %v603
      %v605 = vpop.f32.mrb[0].mxu0
      %606 = vmatprep.mubr.bf16.mxu0 0
      %607 = vmatmul.mubr.bf16.gmra.mrb[0].mxu0 %v554
      %v608 = vpop.f32.mrb[0].mxu0
      %v609 = vadd.f32 %v507, %v608
      %v610 = vpop.f32.mrb[0].mxu0
      %v611 = vpop.f32.mrb[0].mxu0
      %v612 = vadd.f32 %v510, %v611
      %v613 = vpop.f32.mrb[0].mxu0
      %614 = vmatprep.mubr.bf16.mxu0 0
      %615 = vmatmul.mubr.bf16.gmra.mrb[0].mxu0 %v557
      %v616 = vpop.f32.mrb[0].mxu0
      %v617 = vadd.f32 %v515, %v616
      %v618 = vpop.f32.mrb[0].mxu0
      %v619 = vpop.f32.mrb[0].mxu0
      %v620 = vadd.f32 %v518, %v619
      %v621 = vpop.f32.mrb[0].mxu0
      %622 = vmatprep.mubr.bf16.mxu0 0
      %623 = vmatmul.mubr.bf16.gmra.mrb[0].mxu0 %v560
      %v624 = vpop.f32.mrb[0].mxu0
      %v625 = vadd.f32 %v523, %v624
      %v626 = vpop.f32.mrb[0].mxu0
      %v627 = vpop.f32.mrb[0].mxu0
      %v628 = vadd.f32 %v526, %v627
      %v629 = vpop.f32.mrb[0].mxu0
      %630 = vdwg.mxu0
      %v631 = vld [vmem:[%s391] sm:$0xff]
      %v632 = vld [vmem:[%s391 + $0x8] sm:$0xff]
      %v633 = vld [vmem:[%s391 + $0x10] sm:$0xff]
      %v634 = vld [vmem:[%s391 + $0x18] sm:$0xff]
      %v635 = vld [vmem:[%s391 + $0x20] sm:$0xff]
      %v636 = vld [vmem:[%s391 + $0x28] sm:$0xff]
      %v637 = vld [vmem:[%s391 + $0x30] sm:$0xff]
      %v638 = vld [vmem:[%s391 + $0x38] sm:$0xff]
      %v639 = vld [vmem:[%s6] sm:$0xf]
      %v640 = vld [vmem:[%s6 + $0x4] sm:$0xf]
      %v641 = vld [vmem:[%s6 + $0x8] sm:$0xf]
      %v642 = vld [vmem:[%s6 + $0xc] sm:$0xf]
      %v643 = vld [vmem:[%s6 + $0x10] sm:$0xf]
      %v644 = vld [vmem:[%s6 + $0x14] sm:$0xf]
      %v645 = vld [vmem:[%s6 + $0x18] sm:$0xf]
      %v646 = vld [vmem:[%s6 + $0x1c] sm:$0xf]
      %v647 = vld [vmem:[%s6 + $0x20] sm:$0xf]
      %v648 = vld [vmem:[%s6 + $0x24] sm:$0xf]
      %v649 = vld [vmem:[%s6 + $0x28] sm:$0xf]
      %v650 = vld [vmem:[%s6 + $0x2c] sm:$0xf]
      %v651 = vld [vmem:[%s6 + $0x30] sm:$0xf]
      %v652 = vld [vmem:[%s6 + $0x34] sm:$0xf]
      %v653 = vld [vmem:[%s6 + $0x38] sm:$0xf]
      %v654 = vld [vmem:[%s6 + $0x3c] sm:$0xf]
      %v655 = vld [vmem:[%s6 + $0x40] sm:$0xf]
      %v656 = vld [vmem:[%s6 + $0x44] sm:$0xf]
      %v665 = vunpack.c.l.b16 %v631
      %v666 = vunpack.c.h.b16 %v631
      %v667 = vunpack.c.l.b16 %v632
      %v668 = vunpack.c.h.b16 %v632
      %v669 = vunpack.c.l.b16 %v633
      %v670 = vunpack.c.h.b16 %v633
      %v671 = vunpack.c.l.b16 %v634
      %v672 = vunpack.c.h.b16 %v634
      %v673 = vunpack.c.l.b16 %v635
      %v674 = vunpack.c.h.b16 %v635
      %v675 = vunpack.c.l.b16 %v636
      %v676 = vunpack.c.h.b16 %v636
      %v677 = vunpack.c.l.b16 %v637
      %v678 = vunpack.c.h.b16 %v637
      %v679 = vunpack.c.l.b16 %v638
      %v680 = vunpack.c.h.b16 %v638
      %v681 = vpack.c.b16 %v667, %v665
      %v682 = vpack.c.b16 %v668, %v666
      %v683 = vpack.c.b16 %v671, %v669
      %v684 = vpack.c.b16 %v672, %v670
      %v685 = vpack.c.b16 %v675, %v673
      %v686 = vpack.c.b16 %v676, %v674
      %v687 = vpack.c.b16 %v679, %v677
      %v688 = vpack.c.b16 %v680, %v678
      %v711 = vunpack.c.l.b16 %v639
      %v712 = vunpack.c.l.b16 %v640
      %v713 = vunpack.c.l.b16 %v641
      %v714 = vunpack.c.l.b16 %v642
      %v715 = vunpack.c.l.b16 %v643
      %v716 = vunpack.c.l.b16 %v644
      %v717 = vunpack.c.l.b16 %v645
      %v718 = vunpack.c.l.b16 %v646
      %v719 = vunpack.c.l.b16 %v647
      %v720 = vunpack.c.l.b16 %v648
      %v721 = vunpack.c.l.b16 %v649
      %v722 = vunpack.c.l.b16 %v650
      %v723 = vunpack.c.l.b16 %v651
      %v724 = vunpack.c.l.b16 %v652
      %v725 = vunpack.c.l.b16 %v653
      %v726 = vunpack.c.l.b16 %v654
      %v727 = vunpack.c.l.b16 %v655
      %v728 = vunpack.c.l.b16 %v656
      %v729 = vpack.c.b16 %v712, %v711
      %v730 = vpack.c.b16 %v714, %v713
      %v731 = vpack.c.b16 %v716, %v715
      %v732 = vpack.c.b16 %v718, %v717
      %v733 = vpack.c.b16 %v720, %v719
      %v734 = vpack.c.b16 %v722, %v721
      %v735 = vpack.c.b16 %v724, %v723
      %v736 = vpack.c.b16 %v726, %v725
      %v737 = vpack.c.b16 %v728, %v727
      %v748 = vsel %vm451, %v682, 0
      %v751 = vsel %vm451, %v684, 0
      %v754 = vsel %vm451, %v686, 0
      %v757 = vsel %vm451, %v688, 0
      %759 = vmatprep.subr.bf16.mxu0 0
      %760 = vmatpush1.bf16.msra.mxu0 %v729
      %761 = vmatprep.subr.bf16.mxu0 0
      %762 = vmatpush1.bf16.msra.mxu0 %v730
      %763 = vmatprep.subr.bf16.mxu0 0
      %764 = vmatpush1.bf16.msra.mxu0 %v731
      %765 = vmatprep.subr.bf16.mxu0 0
      %766 = vmatpush1.bf16.msra.mxu0 %v732
      %767 = vmatprep.subr.bf16.mxu0 0
      %768 = vmatpush1.bf16.msra.mxu0 %v733
      %769 = vmatprep.subr.bf16.mxu0 0
      %770 = vmatpush1.bf16.msra.mxu0 %v734
      %771 = vmatprep.subr.bf16.mxu0 0
      %772 = vmatpush1.bf16.msra.mxu0 %v735
      %773 = vmatprep.subr.bf16.mxu0 0
      %774 = vmatpush1.bf16.msra.mxu0 %v736
      %775 = vmatprep.subr.bf16.mxu0 0
      %776 = vmatpush1.bf16.msra.mxu0 %v737
      %777 = vmatprep.subr.bf16.mxu0 0
      %778 = vmatpush1.bf16.msra.mxu0 0
      %779 = vmatprep.subr.bf16.mxu0 0
      %780 = vmatpush1.bf16.msra.mxu0 0
      %781 = vmatprep.subr.bf16.mxu0 0
      %782 = vmatpush1.bf16.msra.mxu0 0
      %783 = vmatprep.subr.bf16.mxu0 0
      %784 = vmatpush1.bf16.msra.mxu0 0
      %785 = vmatprep.subr.bf16.mxu0 0
      %786 = vmatpush1.bf16.msra.mxu0 0
      %787 = vmatprep.subr.bf16.mxu0 0
      %788 = vmatpush1.bf16.msra.mxu0 0
      %789 = vmatprep.subr.bf16.mxu0 0
      %790 = vmatpush1.bf16.msra.mxu0 0
      %791 = vmatprep.mubr.bf16.mxu0 %v748
      %792 = vmatmul.mubr.bf16.gmra.mrb[0].mxu0 %v681
      %v793 = vpop.f32.mrb[0].mxu0
      %v794 = vadd.f32 0.0, %v793
      %v795 = vpop.f32.mrb[0].mxu0
      %v796 = vpop.f32.mrb[0].mxu0
      %v797 = vadd.f32 0.0, %v796
      %v798 = vpop.f32.mrb[0].mxu0
      %799 = vmatprep.mubr.bf16.mxu0 %v751
      %800 = vmatmul.mubr.bf16.gmra.mrb[0].mxu0 %v683
      %v801 = vpop.f32.mrb[0].mxu0
      %v802 = vadd.f32 0.0, %v801
      %v803 = vpop.f32.mrb[0].mxu0
      %v804 = vpop.f32.mrb[0].mxu0
      %v805 = vadd.f32 0.0, %v804
      %v806 = vpop.f32.mrb[0].mxu0
      %807 = vmatprep.mubr.bf16.mxu0 %v754
      %808 = vmatmul.mubr.bf16.gmra.mrb[0].mxu0 %v685
      %v809 = vpop.f32.mrb[0].mxu0
      %v810 = vadd.f32 0.0, %v809
      %v811 = vpop.f32.mrb[0].mxu0
      %v812 = vpop.f32.mrb[0].mxu0
      %v813 = vadd.f32 0.0, %v812
      %v814 = vpop.f32.mrb[0].mxu0
      %815 = vmatprep.mubr.bf16.mxu0 %v757
      %816 = vmatmul.mubr.bf16.gmra.mrb[0].mxu0 %v687
      %v817 = vpop.f32.mrb[0].mxu0
      %v818 = vadd.f32 0.0, %v817
      %v819 = vpop.f32.mrb[0].mxu0
      %v820 = vpop.f32.mrb[0].mxu0
      %v821 = vadd.f32 0.0, %v820
      %v822 = vpop.f32.mrb[0].mxu0
      %823 = vdwg.mxu0
      %v824 = vadd.f32 %v601, %v794
      %v825 = vadd.f32 %v604, %v797
      %v826 = vadd.f32 %v609, %v802
      %v827 = vadd.f32 %v612, %v805
      %v828 = vadd.f32 %v617, %v810
      %v829 = vadd.f32 %v620, %v813
      %v830 = vadd.f32 %v625, %v818
      %v831 = vadd.f32 %v628, %v821
      %v832 = vld [vmem:[%s397] sm:$0xf]
      %v833 = vld [vmem:[%s397 + $0x4] sm:$0xf]
      %v834 = vld [vmem:[%s397 + $0x8] sm:$0xf]
      %v835 = vld [vmem:[%s397 + $0xc] sm:$0xf]
      %v836 = vld [vmem:[%s397 + $0x10] sm:$0xf]
      %v837 = vld [vmem:[%s397 + $0x14] sm:$0xf]
      %v838 = vld [vmem:[%s397 + $0x18] sm:$0xf]
      %v839 = vld [vmem:[%s397 + $0x1c] sm:$0xf]
      %v840 = vld [vmem:[%s7] sm:$0xf]
      %v841 = vld [vmem:[%s7 + $0x4] sm:$0xf]
      %v850 = vunpack.c.l.b16 %v832
      %v851 = vunpack.c.l.b16 %v833
      %v852 = vunpack.c.l.b16 %v834
      %v853 = vunpack.c.l.b16 %v835
      %v854 = vunpack.c.l.b16 %v836
      %v855 = vunpack.c.l.b16 %v837
      %v856 = vunpack.c.l.b16 %v838
      %v857 = vunpack.c.l.b16 %v839
      %v858 = vpack.c.b16 %v851, %v850
      %v859 = vpack.c.b16 %v853, %v852
      %v860 = vpack.c.b16 %v855, %v854
      %v861 = vpack.c.b16 %v857, %v856
      %v864 = vunpack.c.l.b16 %v840
      %v865 = vunpack.c.l.b16 %v841
      %v866 = vpack.c.b16 %v865, %v864
      %v869 = vsel %vm451, %v858, 0
      %v872 = vsel %vm451, %v859, 0
      %v875 = vsel %vm451, %v860, 0
      %v878 = vsel %vm451, %v861, 0
      %880 = vmatprep.subr.bf16.mxu0 0
      %881 = vmatpush1.bf16.msra.mxu0 %v866
      %882 = vmatprep.subr.bf16.mxu0 0
      %883 = vmatpush1.bf16.msra.mxu0 0
      %884 = vmatprep.subr.bf16.mxu0 0
      %885 = vmatpush1.bf16.msra.mxu0 0
      %886 = vmatprep.subr.bf16.mxu0 0
      %887 = vmatpush1.bf16.msra.mxu0 0
      %888 = vmatprep.subr.bf16.mxu0 0
      %889 = vmatpush1.bf16.msra.mxu0 0
      %890 = vmatprep.subr.bf16.mxu0 0
      %891 = vmatpush1.bf16.msra.mxu0 0
      %892 = vmatprep.subr.bf16.mxu0 0
      %893 = vmatpush1.bf16.msra.mxu0 0
      %894 = vmatprep.subr.bf16.mxu0 0
      %895 = vmatpush1.bf16.msra.mxu0 0
      %896 = vmatprep.subr.bf16.mxu0 0
      %897 = vmatpush1.bf16.msra.mxu0 0
      %898 = vmatprep.subr.bf16.mxu0 0
      %899 = vmatpush1.bf16.msra.mxu0 0
      %900 = vmatprep.subr.bf16.mxu0 0
      %901 = vmatpush1.bf16.msra.mxu0 0
      %902 = vmatprep.subr.bf16.mxu0 0
      %903 = vmatpush1.bf16.msra.mxu0 0
      %904 = vmatprep.subr.bf16.mxu0 0
      %905 = vmatpush1.bf16.msra.mxu0 0
      %906 = vmatprep.subr.bf16.mxu0 0
      %907 = vmatpush1.bf16.msra.mxu0 0
      %908 = vmatprep.subr.bf16.mxu0 0
      %909 = vmatpush1.bf16.msra.mxu0 0
      %910 = vmatprep.subr.bf16.mxu0 0
      %911 = vmatpush1.bf16.msra.mxu0 0
      %912 = vmatprep.mubr.bf16.mxu0 0
      %913 = vmatmul.mubr.bf16.gmra.mrb[0].mxu0 %v869
      %v914 = vpop.f32.mrb[0].mxu0
      %v915 = vadd.f32 0.0, %v914
      %v916 = vpop.f32.mrb[0].mxu0
      %v917 = vpop.f32.mrb[0].mxu0
      %v918 = vadd.f32 0.0, %v917
      %v919 = vpop.f32.mrb[0].mxu0
      %920 = vmatprep.mubr.bf16.mxu0 0
      %921 = vmatmul.mubr.bf16.gmra.mrb[0].mxu0 %v872
      %v922 = vpop.f32.mrb[0].mxu0
      %v923 = vadd.f32 0.0, %v922
      %v924 = vpop.f32.mrb[0].mxu0
      %v925 = vpop.f32.mrb[0].mxu0
      %v926 = vadd.f32 0.0, %v925
      %v927 = vpop.f32.mrb[0].mxu0
      %928 = vmatprep.mubr.bf16.mxu0 0
      %929 = vmatmul.mubr.bf16.gmra.mrb[0].mxu0 %v875
      %v930 = vpop.f32.mrb[0].mxu0
      %v931 = vadd.f32 0.0, %v930
      %v932 = vpop.f32.mrb[0].mxu0
      %v933 = vpop.f32.mrb[0].mxu0
      %v934 = vadd.f32 0.0, %v933
      %v935 = vpop.f32.mrb[0].mxu0
      %936 = vmatprep.mubr.bf16.mxu0 0
      %937 = vmatmul.mubr.bf16.gmra.mrb[0].mxu0 %v878
      %v938 = vpop.f32.mrb[0].mxu0
      %v939 = vadd.f32 0.0, %v938
      %v940 = vpop.f32.mrb[0].mxu0
      %v941 = vpop.f32.mrb[0].mxu0
      %v942 = vadd.f32 0.0, %v941
      %v943 = vpop.f32.mrb[0].mxu0
      %944 = vdwg.mxu0
      %v945 = vadd.f32 %v824, %v915
      %v946 = vadd.f32 %v825, %v918
      %v947 = vadd.f32 %v826, %v923
      %v948 = vadd.f32 %v827, %v926
      %v949 = vadd.f32 %v828, %v931
      %v950 = vadd.f32 %v829, %v934
      %v951 = vadd.f32 %v830, %v939
      %v952 = vadd.f32 %v831, %v942
      %v953 = vld [vmem:[%s8] sm:$0x1]
      %v955 = vlaneseq
      %v956 = vshrl.u32 %v955, 7
      %v957 = vsub.s32 0, %v956
      %v958 = vrot.slane %v953, %v957
      %v960 = vadd.f32 %v945, %v958
      %v961 = vadd.f32 %v946, %v958
      %v962 = vadd.f32 %v947, %v958
      %v963 = vadd.f32 %v948, %v958
      %v964 = vadd.f32 %v949, %v958
      %v965 = vadd.f32 %v950, %v958
      %v966 = vadd.f32 %v951, %v958
      %v967 = vadd.f32 %v952, %v958
      %v968 = vsub.f32 0.0, %v960
      %v969 = vsub.f32 0.0, %v961
      %v970 = vsub.f32 0.0, %v962
      %v971 = vsub.f32 0.0, %v963
      %v972 = vsub.f32 0.0, %v964
      %v973 = vsub.f32 0.0, %v965
      %v974 = vsub.f32 0.0, %v966
      %v975 = vsub.f32 0.0, %v967
      %v976 = vmul.f32 %v968, 1.442695
      %v977 = vpow.pop %v976
      %v978 = vmul.f32 %v969, 1.442695
      %v979 = vpow.pop %v978
      %v980 = vmul.f32 %v970, 1.442695
      %v981 = vpow.pop %v980
      %v982 = vmul.f32 %v971, 1.442695
      %v983 = vpow.pop %v982
      %v984 = vmul.f32 %v972, 1.442695
      %v985 = vpow.pop %v984
      %v986 = vmul.f32 %v973, 1.442695
      %v987 = vpow.pop %v986
      %v988 = vmul.f32 %v974, 1.442695
      %v989 = vpow.pop %v988
      %v990 = vmul.f32 %v975, 1.442695
      %v991 = vpow.pop %v990
      %v992 = vadd.f32 %v977, 1.0
      %v993 = vadd.f32 %v979, 1.0
      %v994 = vadd.f32 %v981, 1.0
      %v995 = vadd.f32 %v983, 1.0
      %v996 = vadd.f32 %v985, 1.0
      %v997 = vadd.f32 %v987, 1.0
      %v998 = vadd.f32 %v989, 1.0
      %v999 = vadd.f32 %v991, 1.0
      %v1000 = vrcp.pop %v992
      %v1001 = vrcp.pop %v993
      %v1002 = vrcp.pop %v994
      %v1003 = vrcp.pop %v995
      %v1004 = vrcp.pop %v996
      %v1005 = vrcp.pop %v997
      %v1006 = vrcp.pop %v998
      %v1007 = vrcp.pop %v999
      %v1008 = vmul.f32 %v960, %v1000
      %v1009 = vmul.f32 %v961, %v1001
      %v1010 = vmul.f32 %v962, %v1002
      %v1011 = vmul.f32 %v963, %v1003
      %v1012 = vmul.f32 %v964, %v1004
      %v1013 = vmul.f32 %v965, %v1005
      %v1014 = vmul.f32 %v966, %v1006
      %v1015 = vmul.f32 %v967, %v1007
      %1016 = vst [vmem:[%s403] sm:$0xff] %v1008
      %1017 = vst [vmem:[%s403 + $0x8] sm:$0xff] %v1009
      %1018 = vst [vmem:[%s403 + $0x10] sm:$0xff] %v1010
      %1019 = vst [vmem:[%s403 + $0x18] sm:$0xff] %v1011
      %1020 = vst [vmem:[%s403 + $0x20] sm:$0xff] %v1012
      %1021 = vst [vmem:[%s403 + $0x28] sm:$0xff] %v1013
      %1022 = vst [vmem:[%s403 + $0x30] sm:$0xff] %v1014
      %1023 = vst [vmem:[%s403 + $0x38] sm:$0xff] %v1015
      %s1024 = smul.u32 8, %s20
      %p1025 = scmp.lt.s32.totalorder %s1024, 15
      %s1026 = scalar_select %p1025, %s1024, 15
      %s1027 = smul.addr %s1026, 8
      %s1028 = scalar_lea.vmem %s9, %s1027
      // Predicated region
      $region57: #{mcam_forward.3} parent=55 // pred_check
        %p1029 = pneg %p247
      $region58: #{mcam_forward.3} parent=55 // pred_check_branch
        %1031 = sbr.rel (%p1029) target = $region60
      $region59: #{mcam_forward.3} parent=55 // pred_region
        %s1032 = smul.u32 8, %s20
      $region60: #{mcam_forward.3} parent=55 // pred_fallthru
        _
    $region56: #{mcam_forward.3} parent=5 // pred_fallthru
      _
    %p1033 = scmp.le.s32.totalorder 2, %s15
    // Predicated region
    $region61: #{mcam_forward.3} parent=5 // pred_check
      %p1034 = pneg %p1033
    $region62: #{mcam_forward.3} parent=5 // pred_check_branch
      %1036 = sbr.rel (%p1034) target = $region64
    $region63: #{mcam_forward.3} parent=5 // pred_region
      %s1037 = ssub.s32 %s15, 2
      // Predicated region
      $region65: #{mcam_forward.3} parent=63 // pred_check
        %p1038 = pneg %p253
      $region66: #{mcam_forward.3} parent=63 // pred_check_branch
        %1040 = sbr.rel (%p1038) target = $region68
      $region67: #{mcam_forward.3} parent=63 // pred_region
        %s1041 = smul.u32 8, %s21
        %p1042 = scmp.lt.s32.totalorder %s1041, 15
        %s1043 = scalar_select %p1042, %s1041, 15
        %s1044 = smul.addr %s1043, 8
        %s1045 = scalar_lea.vmem %s9, %s1044
      $region68: #{mcam_forward.3} parent=63 // pred_fallthru
        _
    $region64: #{mcam_forward.3} parent=5 // pred_fallthru
      _
  $region6: #{mcam_forward.3} parent=0 // loop_footer
    %s19 = sadd.s32 1, %s15
  $region7: #{mcam_forward.3} parent=0 // loop_footer_branch
    %14 = sbr.rel target = $region3
  $region8: #{mcam_forward.3} parent=0 // loop_exit
    _

// kernel: mcam_forward.4
$region0: #{mcam_forward.4}
  #allocation0 [shape = 'u32[]', space=smem, size = 0x4, offset = 0x4, fixed_abs, tag = 'smem constant byte address 0x4 - core index']
  #allocation1 [shape = 'u32[144,128]{1,0:T(1,128)}', space=vmem, size = 0x12000, scoped, tag = 'internal scratch']
  #allocation2 [shape = 'f32[12,24,128]{2,1,0:T(8,128)}', space=vmem, size = 0x24000, scoped, tag = 'scratch operand']
  %s0 = inlined_call_operand.vmem [shape: f32[2,8,8,128], index: 0, kind: input, shape index: {}]
  %s1 = inlined_call_operand.vmem [shape: f32[25,128], index: 1, kind: input, shape index: {}]
  %s2 = inlined_call_operand.vmem [shape: f32[1,128], index: 2, kind: input, shape index: {}]
  %s3 = inlined_call_operand.vmem [shape: bf16[2,8,8,128], index: 3, kind: output, shape index: {}]
  %s4 = sld [smem:[#allocation0]]
  $region45: #{mcam_forward.4} parent=0
    _
  %s6 = ssub.s32 1, %s4
  %s7 = scalar_select 0, %s6, %s4
  loop: start=0, step=1, limit=4
  $region2: #{mcam_forward.4} parent=0 // loop_pre_header
    _
  $region3: #{mcam_forward.4} parent=0 // loop_header
    %s9 = sphi 0, %s13
    %p10 = scmp.ge.s32.totalorder %s9, 4
    %s19 = sphi 0, %s21
    %s22 = sphi 0, %s19
    %s23 = sphi 0, %s22
    %s39 = sphi 0, %s23
    %s43 = sphi 0, %s43
    %s45 = sphi 0, %s43
    %s46 = sphi 0, %s45
    %s60 = sphi 0, %s46
    %s64 = sphi 0, %s64
    %s66 = sphi 0, %s64
    %s67 = sphi 0, %s66
    %s81 = sphi 0, %s67
    %s87 = sphi 0, %s89
    %s90 = sphi 0, %s87
    %s91 = sphi 0, %s90
    %s107 = sphi 0, %s91
  $region4: #{mcam_forward.4} parent=0 // loop_header_branch
    %12 = sbr.rel (%p10) target = $region8
  $region5: #{mcam_forward.4} parent=0 // loop_body
    %s14 = ssub.s32 %s9, 1
    %s15 = ssub.s32 %s9, 2
    %s16 = sadd.s32 %s9, 1
    %s17 = ssub.s32 %s9, %s16
    %p18 = scmp.eq.s32.totalorder %s17, 0
    %s20 = sadd.s32 %s19, 1
    %s21 = scalar_select %p18, %s19, %s20
    %p24 = pneg %p18
    %p25 = scmp.eq.s32.totalorder %s9, 1
    %p26 = por %p24, %p25
    %p27 = scmp.ne.s32.totalorder %s19, %s22
    %p28 = scmp.eq.s32.totalorder %s9, 0
    %p29 = por %p27, %p28
    %p30 = scmp.ne.s32.totalorder %s19, %s22
    %p31 = scmp.eq.s32.totalorder %s14, 1
    %p32 = por %p30, %p31
    %p33 = scmp.ne.s32.totalorder %s22, %s23
    %p34 = scmp.eq.s32.totalorder %s14, 0
    %p35 = por %p33, %p34
    %p36 = scmp.ne.s32.totalorder %s22, %s23
    %p37 = scmp.eq.s32.totalorder %s15, 1
    %p38 = por %p36, %p37
    %p40 = scmp.ne.s32.totalorder %s23, %s39
    %p41 = scmp.eq.s32.totalorder %s15, 0
    %p42 = por %p40, %p41
    %s44 = sadd.s32 %s43, 1
    %p47 = scmp.eq.s32.totalorder %s9, 1
    %p48 = scmp.ne.s32.totalorder %s43, %s45
    %p49 = scmp.eq.s32.totalorder %s9, 0
    %p50 = por %p48, %p49
    %p51 = scmp.ne.s32.totalorder %s43, %s45
    %p52 = scmp.eq.s32.totalorder %s14, 1
    %p53 = por %p51, %p52
    %p54 = scmp.ne.s32.totalorder %s45, %s46
    %p55 = scmp.eq.s32.totalorder %s14, 0
    %p56 = por %p54, %p55
    %p57 = scmp.ne.s32.totalorder %s45, %s46
    %p58 = scmp.eq.s32.totalorder %s15, 1
    %p59 = por %p57, %p58
    %p61 = scmp.ne.s32.totalorder %s46, %s60
    %p62 = scmp.eq.s32.totalorder %s15, 0
    %p63 = por %p61, %p62
    %s65 = sadd.s32 %s64, 1
    %p68 = scmp.eq.s32.totalorder %s9, 1
    %p69 = scmp.ne.s32.totalorder %s64, %s66
    %p70 = scmp.eq.s32.totalorder %s9, 0
    %p71 = por %p69, %p70
    %p72 = scmp.ne.s32.totalorder %s64, %s66
    %p73 = scmp.eq.s32.totalorder %s14, 1
    %p74 = por %p72, %p73
    %p75 = scmp.ne.s32.totalorder %s66, %s67
    %p76 = scmp.eq.s32.totalorder %s14, 0
    %p77 = por %p75, %p76
    %p78 = scmp.ne.s32.totalorder %s66, %s67
    %p79 = scmp.eq.s32.totalorder %s15, 1
    %p80 = por %p78, %p79
    %p82 = scmp.ne.s32.totalorder %s67, %s81
    %p83 = scmp.eq.s32.totalorder %s15, 0
    %p84 = por %p82, %p83
    %s85 = ssub.s32 %s9, %s16
    %p86 = scmp.eq.s32.totalorder %s85, 0
    %s88 = sadd.s32 %s87, 1
    %s89 = scalar_select %p86, %s87, %s88
    %p92 = pneg %p86
    %p93 = scmp.eq.s32.totalorder %s9, 1
    %p94 = por %p92, %p93
    %p95 = scmp.ne.s32.totalorder %s87, %s90
    %p96 = scmp.eq.s32.totalorder %s9, 0
    %p97 = por %p95, %p96
    %p98 = scmp.ne.s32.totalorder %s87, %s90
    %p99 = scmp.eq.s32.totalorder %s14, 1
    %p100 = por %p98, %p99
    %p101 = scmp.ne.s32.totalorder %s90, %s91
    %p102 = scmp.eq.s32.totalorder %s14, 0
    %p103 = por %p101, %p102
    %p104 = scmp.ne.s32.totalorder %s90, %s91
    %p105 = scmp.eq.s32.totalorder %s15, 1
    %p106 = por %p104, %p105
    %p108 = scmp.ne.s32.totalorder %s91, %s107
    %p109 = scmp.eq.s32.totalorder %s15, 0
    %p110 = por %p108, %p109
    %p111 = scmp.le.s32.totalorder 1, %s9
    %p112 = scmp.lt.s32.totalorder %s9, 3
    %p113 = pnand %p111, %p112
    %p114 = pneg %p113
    // Predicated region
    $region9: #{mcam_forward.4} parent=5 // pred_check
      _
    $region10: #{mcam_forward.4} parent=5 // pred_check_branch
      %116 = sbr.rel (%p113) target = $region12
    $region11: #{mcam_forward.4} parent=5 // pred_region
      %s117 = ssub.s32 %s9, 1
      // Predicated region
      $region13: #{mcam_forward.4} parent=11 // pred_check
        %p118 = pneg %p56
      $region14: #{mcam_forward.4} parent=11 // pred_check_branch
        %120 = sbr.rel (%p118) target = $region16
      $region15: #{mcam_forward.4} parent=11 // pred_region
        _
      $region16: #{mcam_forward.4} parent=11 // pred_fallthru
        _
      // Predicated region
      $region17: #{mcam_forward.4} parent=11 // pred_check
        %p121 = pneg %p77
      $region18: #{mcam_forward.4} parent=11 // pred_check_branch
        %123 = sbr.rel (%p121) target = $region20
      $region19: #{mcam_forward.4} parent=11 // pred_region
        _
      $region20: #{mcam_forward.4} parent=11 // pred_fallthru
        _
    $region12: #{mcam_forward.4} parent=5 // pred_fallthru
      _
    %p124 = scmp.lt.s32.totalorder %s9, 2
    // Predicated region
    $region21: #{mcam_forward.4} parent=5 // pred_check
      %p125 = pneg %p124
    $region22: #{mcam_forward.4} parent=5 // pred_check_branch
      %127 = sbr.rel (%p125) target = $region24
    $region23: #{mcam_forward.4} parent=5 // pred_region
      // Predicated region
      $region25: #{mcam_forward.4} parent=23 // pred_check
        %p128 = pneg %p29
      $region26: #{mcam_forward.4} parent=23 // pred_check_branch
        %130 = sbr.rel (%p128) target = $region28
      $region27: #{mcam_forward.4} parent=23 // pred_region
        %p131 = scmp.lt.s32.totalorder %s9, 1
        %s132 = scalar_select %p131, %s9, 1
        %s133 = smul.addr %s132, 8
        %s134 = smul.addr %s133, 8
        %s135 = scalar_lea.vmem %s0, %s134
      $region28: #{mcam_forward.4} parent=23 // pred_fallthru
        _
    $region24: #{mcam_forward.4} parent=5 // pred_fallthru
      _
    %p136 = scmp.le.s32.totalorder 1, %s9
    %p137 = scmp.lt.s32.totalorder %s9, 3
    %p138 = pnand %p136, %p137
    %p139 = pneg %p138
    // Predicated region
    $region29: #{mcam_forward.4} parent=5 // pred_check
      _
    $region30: #{mcam_forward.4} parent=5 // pred_check_branch
      %141 = sbr.rel (%p138) target = $region32
    $region31: #{mcam_forward.4} parent=5 // pred_region
      %s142 = ssub.s32 %s9, 1
      %p143 = scmp.lt.s32.totalorder %s14, 1
      %s144 = scalar_select %p143, %s14, 1
      %s145 = smul.addr %s144, 8
      %s146 = smul.addr %s145, 8
      %s147 = scalar_lea.vmem %s0, %s146
      %p148 = pneg %p35
      %p149 = pneg %p32
      %p150 = pneg %p56
      %p151 = pneg %p53
      %p152 = pneg %p77
      %p153 = pneg %p74
      %p154 = pneg %p103
      %p155 = pneg %p100
      %p156 = scmp.lt.s32.totalorder %s14, 1
      %s157 = scalar_select %p156, %s14, 1
      %s158 = smul.addr %s157, 8
      %s159 = smul.addr %s158, 4
      %s160 = scalar_lea.vmem %s3, %s159
      %p161 = scmp.lt.s32.totalorder %s14, 1
      %s162 = scalar_select %p161, %s14, 1
      %s163 = smul.addr %s162, 8
      %s164 = smul.addr %s163, 8
      %s165 = scalar_lea.vmem %s0, %s164
      %p166 = scmp.lt.s32.totalorder %s14, 1
      %s167 = scalar_select %p166, %s14, 1
      %s168 = smul.addr %s167, 8
      %s169 = smul.addr %s168, 4
      %s170 = scalar_lea.vmem %s3, %s169
      %v171 = vld [vmem:[%s165] sm:$0xff]
      %v172 = vld [vmem:[%s165 + $0x8] sm:$0xff]
      %v173 = vld [vmem:[%s165 + $0x10] sm:$0xff]
      %v174 = vld [vmem:[%s165 + $0x18] sm:$0xff]
      %v175 = vld [vmem:[%s165 + $0x20] sm:$0xff]
      %v176 = vld [vmem:[%s165 + $0x28] sm:$0xff]
      %v177 = vld [vmem:[%s165 + $0x30] sm:$0xff]
      %v178 = vld [vmem:[%s165 + $0x38] sm:$0xff]
      %179 = vst [vmem:[#allocation2] sm:$0xff] 0.0
      %180 = vst [vmem:[#allocation2 + $0x8] sm:$0xff] 0.0
      %181 = vst [vmem:[#allocation2 + $0x10] sm:$0xff] 0.0
      %182 = vst [vmem:[#allocation2 + $0x18] sm:$0xff] 0.0
      %183 = vst [vmem:[#allocation2 + $0x20] sm:$0xff] 0.0
      %184 = vst [vmem:[#allocation2 + $0x28] sm:$0xff] 0.0
      %s185 = scalar_lea.vmem [#allocation2], 240
      %186 = vst [vmem:[%s185] sm:$0xff] 0.0
      %187 = vst [vmem:[%s185 + $0x8] sm:$0xff] 0.0
      %188 = vst [vmem:[%s185 + $0x10] sm:$0xff] 0.0
      %189 = vst [vmem:[%s185 + $0x18] sm:$0xff] 0.0
      %190 = vst [vmem:[%s185 + $0x20] sm:$0xff] 0.0
      %191 = vst [vmem:[%s185 + $0x28] sm:$0xff] 0.0
      %s192 = scalar_lea.vmem [#allocation2], 48
      %193 = vst [vmem:[%s192] sm:$0xff] 0.0
      %194 = vst [vmem:[%s192 + $0x18] sm:$0xff] 0.0
      %195 = vst [vmem:[%s192 + $0x30] sm:$0xff] 0.0
      %196 = vst [vmem:[%s192 + $0x48] sm:$0xff] 0.0
      %197 = vst [vmem:[%s192 + $0x60] sm:$0xff] 0.0
      %198 = vst [vmem:[%s192 + $0x78] sm:$0xff] 0.0
      %199 = vst [vmem:[%s192 + $0x90] sm:$0xff] 0.0
      %200 = vst [vmem:[%s192 + $0xa8] sm:$0xff] 0.0
      %201 = vst [vmem:[%s192 + $0x10] sm:$0xff] 0.0
      %202 = vst [vmem:[%s192 + $0x28] sm:$0xff] 0.0
      %203 = vst [vmem:[%s192 + $0x40] sm:$0xff] 0.0
      %204 = vst [vmem:[%s192 + $0x58] sm:$0xff] 0.0
      %205 = vst [vmem:[%s192 + $0x70] sm:$0xff] 0.0
      %206 = vst [vmem:[%s192 + $0x88] sm:$0xff] 0.0
      %207 = vst [vmem:[%s192 + $0xa0] sm:$0xff] 0.0
      %208 = vst [vmem:[%s192 + $0xb8] sm:$0xff] 0.0
      %209 = vst [vmem:[%s192 + $0x8] sm:$0xff] %v171
      %210 = vst [vmem:[%s192 + $0x20] sm:$0xff] %v172
      %211 = vst [vmem:[%s192 + $0x38] sm:$0xff] %v173
      %212 = vst [vmem:[%s192 + $0x50] sm:$0xff] %v174
      %213 = vst [vmem:[%s192 + $0x68] sm:$0xff] %v175
      %214 = vst [vmem:[%s192 + $0x80] sm:$0xff] %v176
      %215 = vst [vmem:[%s192 + $0x98] sm:$0xff] %v177
      %216 = vst [vmem:[%s192 + $0xb0] sm:$0xff] %v178
      %v217 = vld [vmem:[%s1] sm:$0xff]
      %v218 = vld [vmem:[%s1 + $0x8] sm:$0xff]
      %v219 = vld [vmem:[%s1 + $0x10] sm:$0xff]
      %v220 = vld [vmem:[%s1 + $0x18] sm:$0x1]
      %v221 = vld [vmem:[#allocation2] sm:$0xff]
      %v222 = vld [vmem:[#allocation2 + $0x8] sm:$0xff]
      %v223 = vld [vmem:[#allocation2 + $0x10] sm:$0xff]
      %v224 = vld [vmem:[#allocation2 + $0x18] sm:$0xff]
      %v225 = vld [vmem:[#allocation2 + $0x20] sm:$0xff]
      %v226 = vld [vmem:[#allocation2 + $0x28] sm:$0xff]
      %v227 = vld [vmem:[#allocation2 + $0x30] sm:$0xff]
      %v228 = vld [vmem:[#allocation2 + $0x38] sm:$0xff]
      %v229 = vld [vmem:[#allocation2 + $0x40] sm:$0xff]
      %v230 = vld [vmem:[#allocation2 + $0x48] sm:$0xff]
      %v231 = vld [vmem:[#allocation2 + $0x50] sm:$0xff]
      %v232 = vld [vmem:[#allocation2 + $0x58] sm:$0xff]
      %v233 = vld [vmem:[#allocation2 + $0x60] sm:$0xff]
      %v234 = vld [vmem:[#allocation2 + $0x68] sm:$0xff]
      %v235 = vld [vmem:[#allocation2 + $0x70] sm:$0xff]
      %v236 = vld [vmem:[#allocation2 + $0x78] sm:$0xff]
      %v237 = vld [vmem:[#allocation2 + $0x80] sm:$0xff]
      %v238 = vld [vmem:[#allocation2 + $0x88] sm:$0xff]
      %v239 = vld [vmem:[#allocation2 + $0x90] sm:$0xff]
      %v240 = vld [vmem:[#allocation2 + $0x98] sm:$0xff]
      %v241 = vld [vmem:[#allocation2 + $0xa0] sm:$0xff]
      %v242 = vld [vmem:[#allocation2 + $0xa8] sm:$0xff]
      %v243 = vld [vmem:[#allocation2 + $0xb0] sm:$0xff]
      %v244 = vld [vmem:[#allocation2 + $0xb8] sm:$0xff]
      %v245 = vld [vmem:[#allocation2 + $0xc0] sm:$0xff]
      %v246 = vld [vmem:[#allocation2 + $0xc8] sm:$0xff]
      %v247 = vld [vmem:[#allocation2 + $0xd0] sm:$0xff]
      %v248 = vld [vmem:[#allocation2 + $0xd8] sm:$0xff]
      %v249 = vld [vmem:[#allocation2 + $0xe0] sm:$0xff]
      %v250 = vld [vmem:[#allocation2 + $0xe8] sm:$0xff]
      %v251 = vld [vmem:[#allocation2 + $0xf0] sm:$0xff]
      %v252 = vld [vmem:[#allocation2 + $0xf8] sm:$0xff]
      %v253 = vld [vmem:[#allocation2 + $0x100] sm:$0xff]
      %v254 = vld [vmem:[#allocation2 + $0x108] sm:$0xff]
      %v255 = vld [vmem:[#allocation2 + $0x110] sm:$0xff]
      %v256 = vld [vmem:[#allocation2 + $0x118] sm:$0xff]
      %v257 = vrot.slane %v221, 6
      %v258 = vrot.slane %v224, 6
      %v259 = vrot.slane %v227, 6
      %v260 = vrot.slane %v230, 6
      %v261 = vrot.slane %v233, 6
      %v262 = vrot.slane %v236, 6
      %v263 = vrot.slane %v239, 6
      %v264 = vrot.slane %v242, 6
      %v265 = vrot.slane %v245, 6
      %v266 = vrot.slane %v248, 6
      %v267 = vrot.slane %v251, 6
      %v268 = vrot.slane %v254, 6
      %v269 = vrot.slane %v222, 6
      %v270 = vrot.slane %v225, 6
      %v271 = vrot.slane %v228, 6
      %v272 = vrot.slane %v231, 6
      %v273 = vrot.slane %v234, 6
      %v274 = vrot.slane %v237, 6
      %v275 = vrot.slane %v240, 6
      %v276 = vrot.slane %v243, 6
      %v277 = vrot.slane %v246, 6
      %v278 = vrot.slane %v249, 6
      %v279 = vrot.slane %v252, 6
      %v280 = vrot.slane %v255, 6
      %v281 = vlaneseq
      %v282 = vshrl.u32 %v281, 7
      %vm283 = vcmp.lt.s32.totalorder %v282, 2
      %v284 = vsel %vm283, %v257, %v269
      %v285 = vsel %vm283, %v258, %v270
      %v286 = vsel %vm283, %v259, %v271
      %v287 = vsel %vm283, %v260, %v272
      %v288 = vsel %vm283, %v261, %v273
      %v289 = vsel %vm283, %v262, %v274
      %v290 = vsel %vm283, %v263, %v275
      %v291 = vsel %vm283, %v264, %v276
      %v292 = vsel %vm283, %v265, %v277
      %v293 = vsel %vm283, %v266, %v278
      %v294 = vsel %vm283, %v267, %v279
      %v295 = vsel %vm283, %v268, %v280
      %v296 = vlaneseq
      %v297 = vshrl.u32 %v296, 7
      %v298 = vsub.s32 0, %v297
      %v299 = vrot.slane %v217, %v298
      %v300 = vmul.f32 %v284, %v299
      %v301 = vmul.f32 %v285, %v299
      %v302 = vmul.f32 %v286, %v299
      %v303 = vmul.f32 %v287, %v299
      %v304 = vmul.f32 %v288, %v299
      %v305 = vmul.f32 %v289, %v299
      %v306 = vmul.f32 %v290, %v299
      %v307 = vmul.f32 %v291, %v299
      %v308 = vadd.f32 %v300, 0.0
      %v309 = vadd.f32 %v301, 0.0
      %v310 = vadd.f32 %v302, 0.0
      %v311 = vadd.f32 %v303, 0.0
      %v312 = vadd.f32 %v304, 0.0
      %v313 = vadd.f32 %v305, 0.0
      %v314 = vadd.f32 %v306, 0.0
      %v315 = vadd.f32 %v307, 0.0
      %v316 = vlaneseq
      %v317 = vshrl.u32 %v316, 7
      %v318 = vsub.s32 5, %v317
      %v319 = vrot.slane %v217, %v318
      %v320 = vmul.f32 %v285, %v319
      %v321 = vmul.f32 %v286, %v319
      %v322 = vmul.f32 %v287, %v319
      %v323 = vmul.f32 %v288, %v319
      %v324 = vmul.f32 %v289, %v319
      %v325 = vmul.f32 %v290, %v319
      %v326 = vmul.f32 %v291, %v319
      %v327 = vmul.f32 %v292, %v319
      %v328 = vadd.f32 %v308, %v320
      %v329 = vadd.f32 %v309, %v321
      %v330 = vadd.f32 %v310, %v322
      %v331 = vadd.f32 %v311, %v323
      %v332 = vadd.f32 %v312, %v324
      %v333 = vadd.f32 %v313, %v325
      %v334 = vadd.f32 %v314, %v326
      %v335 = vadd.f32 %v315, %v327
      %v336 = vlaneseq
      %v337 = vshrl.u32 %v336, 7
      %v338 = vsub.s32 2, %v337
      %v339 = vrot.slane %v218, %v338
      %v340 = vmul.f32 %v286, %v339
      %v341 = vmul.f32 %v287, %v339
      %v342 = vmul.f32 %v288, %v339
      %v343 = vmul.f32 %v289, %v339
      %v344 = vmul.f32 %v290, %v339
      %v345 = vmul.f32 %v291, %v339
      %v346 = vmul.f32 %v292, %v339
      %v347 = vmul.f32 %v293, %v339
      %v348 = vadd.f32 %v328, %v340
      %v349 = vadd.f32 %v329, %v341
      %v350 = vadd.f32 %v330, %v342
      %v351 = vadd.f32 %v331, %v343
      %v352 = vadd.f32 %v332, %v344
      %v353 = vadd.f32 %v333, %v345
      %v354 = vadd.f32 %v334, %v346
      %v355 = vadd.f32 %v335, %v347
      %v356 = vlaneseq
      %v357 = vshrl.u32 %v356, 7
      %v358 = vsub.s32 7, %v357
      %v359 = vrot.slane %v218, %v358
      %v360 = vmul.f32 %v287, %v359
      %v361 = vmul.f32 %v288, %v359
      %v362 = vmul.f32 %v289, %v359
      %v363 = vmul.f32 %v290, %v359
      %v364 = vmul.f32 %v291, %v359
      %v365 = vmul.f32 %v292, %v359
      %v366 = vmul.f32 %v293, %v359
      %v367 = vmul.f32 %v294, %v359
      %v368 = vadd.f32 %v348, %v360
      %v369 = vadd.f32 %v349, %v361
      %v370 = vadd.f32 %v350, %v362
      %v371 = vadd.f32 %v351, %v363
      %v372 = vadd.f32 %v352, %v364
      %v373 = vadd.f32 %v353, %v365
      %v374 = vadd.f32 %v354, %v366
      %v375 = vadd.f32 %v355, %v367
      %v376 = vlaneseq
      %v377 = vshrl.u32 %v376, 7
      %v378 = vsub.s32 4, %v377
      %v379 = vrot.slane %v219, %v378
      %v380 = vmul.f32 %v288, %v379
      %v381 = vmul.f32 %v289, %v379
      %v382 = vmul.f32 %v290, %v379
      %v383 = vmul.f32 %v291, %v379
      %v384 = vmul.f32 %v292, %v379
      %v385 = vmul.f32 %v293, %v379
      %v386 = vmul.f32 %v294, %v379
      %v387 = vmul.f32 %v295, %v379
      %v388 = vadd.f32 %v368, %v380
      %v389 = vadd.f32 %v369, %v381
      %v390 = vadd.f32 %v370, %v382
      %v391 = vadd.f32 %v371, %v383
      %v392 = vadd.f32 %v372, %v384
      %v393 = vadd.f32 %v373, %v385
      %v394 = vadd.f32 %v374, %v386
      %v395 = vadd.f32 %v375, %v387
      %v396 = vrot.slane %v221, 7
      %v397 = vrot.slane %v224, 7
      %v398 = vrot.slane %v227, 7
      %v399 = vrot.slane %v230, 7
      %v400 = vrot.slane %v233, 7
      %v401 = vrot.slane %v236, 7
      %v402 = vrot.slane %v239, 7
      %v403 = vrot.slane %v242, 7
      %v404 = vrot.slane %v245, 7
      %v405 = vrot.slane %v248, 7
      %v406 = vrot.slane %v251, 7
      %v407 = vrot.slane %v254, 7
      %v408 = vrot.slane %v222, 7
      %v409 = vrot.slane %v225, 7
      %v410 = vrot.slane %v228, 7
      %v411 = vrot.slane %v231, 7
      %v412 = vrot.slane %v234, 7
      %v413 = vrot.slane %v237, 7
      %v414 = vrot.slane %v240, 7
      %v415 = vrot.slane %v243, 7
      %v416 = vrot.slane %v246, 7
      %v417 = vrot.slane %v249, 7
      %v418 = vrot.slane %v252, 7
      %v419 = vrot.slane %v255, 7
      %vm420 = vcmp.lt.s32.totalorder %v282, 1
      %v421 = vsel %vm420, %v396, %v408
      %v422 = vsel %vm420, %v397, %v409
      %v423 = vsel %vm420, %v398, %v410
      %v424 = vsel %vm420, %v399, %v411
      %v425 = vsel %vm420, %v400, %v412
      %v426 = vsel %vm420, %v401, %v413
      %v427 = vsel %vm420, %v402, %v414
      %v428 = vsel %vm420, %v403, %v415
      %v429 = vsel %vm420, %v404, %v416
      %v430 = vsel %vm420, %v405, %v417
      %v431 = vsel %vm420, %v406, %v418
      %v432 = vsel %vm420, %v407, %v419
      %v433 = vlaneseq
      %v434 = vshrl.u32 %v433, 7
      %v435 = vsub.s32 1, %v434
      %v436 = vrot.slane %v217, %v435
      %v437 = vmul.f32 %v421, %v436
      %v438 = vmul.f32 %v422, %v436
      %v439 = vmul.f32 %v423, %v436
      %v440 = vmul.f32 %v424, %v436
      %v441 = vmul.f32 %v425, %v436
      %v442 = vmul.f32 %v426, %v436
      %v443 = vmul.f32 %v427, %v436
      %v444 = vmul.f32 %v428, %v436
      %v445 = vadd.f32 %v388, %v437
      %v446 = vadd.f32 %v389, %v438
      %v447 = vadd.f32 %v390, %v439
      %v448 = vadd.f32 %v391, %v440
      %v449 = vadd.f32 %v392, %v441
      %v450 = vadd.f32 %v393, %v442
      %v451 = vadd.f32 %v394, %v443
      %v452 = vadd.f32 %v395, %v444
      %v453 = vlaneseq
      %v454 = vshrl.u32 %v453, 7
      %v455 = vsub.s32 6, %v454
      %v456 = vrot.slane %v217, %v455
      %v457 = vmul.f32 %v422, %v456
      %v458 = vmul.f32 %v423, %v456
      %v459 = vmul.f32 %v424, %v456
      %v460 = vmul.f32 %v425, %v456
      %v461 = vmul.f32 %v426, %v456
      %v462 = vmul.f32 %v427, %v456
      %v463 = vmul.f32 %v428, %v456
      %v464 = vmul.f32 %v429, %v456
      %v465 = vadd.f32 %v445, %v457
      %v466 = vadd.f32 %v446, %v458
      %v467 = vadd.f32 %v447, %v459
      %v468 = vadd.f32 %v448, %v460
      %v469 = vadd.f32 %v449, %v461
      %v470 = vadd.f32 %v450, %v462
      %v471 = vadd.f32 %v451, %v463
      %v472 = vadd.f32 %v452, %v464
      %v473 = vlaneseq
      %v474 = vshrl.u32 %v473, 7
      %v475 = vsub.s32 3, %v474
      %v476 = vrot.slane %v218, %v475
      %v477 = vmul.f32 %v423, %v476
      %v478 = vmul.f32 %v424, %v476
      %v479 = vmul.f32 %v425, %v476
      %v480 = vmul.f32 %v426, %v476
      %v481 = vmul.f32 %v427, %v476
      %v482 = vmul.f32 %v428, %v476
      %v483 = vmul.f32 %v429, %v476
      %v484 = vmul.f32 %v430, %v476
      %v485 = vadd.f32 %v465, %v477
      %v486 = vadd.f32 %v466, %v478
      %v487 = vadd.f32 %v467, %v479
      %v488 = vadd.f32 %v468, %v480
      %v489 = vadd.f32 %v469, %v481
      %v490 = vadd.f32 %v470, %v482
      %v491 = vadd.f32 %v471, %v483
      %v492 = vadd.f32 %v472, %v484
      %v493 = vlaneseq
      %v494 = vshrl.u32 %v493, 7
      %v495 = vsub.s32 0, %v494
      %v496 = vrot.slane %v219, %v495
      %v497 = vmul.f32 %v424, %v496
      %v498 = vmul.f32 %v425, %v496
      %v499 = vmul.f32 %v426, %v496
      %v500 = vmul.f32 %v427, %v496
      %v501 = vmul.f32 %v428, %v496
      %v502 = vmul.f32 %v429, %v496
      %v503 = vmul.f32 %v430, %v496
      %v504 = vmul.f32 %v431, %v496
      %v505 = vadd.f32 %v485, %v497
      %v506 = vadd.f32 %v486, %v498
      %v507 = vadd.f32 %v487, %v499
      %v508 = vadd.f32 %v488, %v500
      %v509 = vadd.f32 %v489, %v501
      %v510 = vadd.f32 %v490, %v502
      %v511 = vadd.f32 %v491, %v503
      %v512 = vadd.f32 %v492, %v504
      %v513 = vlaneseq
      %v514 = vshrl.u32 %v513, 7
      %v515 = vsub.s32 5, %v514
      %v516 = vrot.slane %v219, %v515
      %v517 = vmul.f32 %v425, %v516
      %v518 = vmul.f32 %v426, %v516
      %v519 = vmul.f32 %v427, %v516
      %v520 = vmul.f32 %v428, %v516
      %v521 = vmul.f32 %v429, %v516
      %v522 = vmul.f32 %v430, %v516
      %v523 = vmul.f32 %v431, %v516
      %v524 = vmul.f32 %v432, %v516
      %v525 = vadd.f32 %v505, %v517
      %v526 = vadd.f32 %v506, %v518
      %v527 = vadd.f32 %v507, %v519
      %v528 = vadd.f32 %v508, %v520
      %v529 = vadd.f32 %v509, %v521
      %v530 = vadd.f32 %v510, %v522
      %v531 = vadd.f32 %v511, %v523
      %v532 = vadd.f32 %v512, %v524
      %v533 = vlaneseq
      %v534 = vshrl.u32 %v533, 7
      %v535 = vsub.s32 2, %v534
      %v536 = vrot.slane %v217, %v535
      %v537 = vmul.f32 %v222, %v536
      %v538 = vmul.f32 %v225, %v536
      %v539 = vmul.f32 %v228, %v536
      %v540 = vmul.f32 %v231, %v536
      %v541 = vmul.f32 %v234, %v536
      %v542 = vmul.f32 %v237, %v536
      %v543 = vmul.f32 %v240, %v536
      %v544 = vmul.f32 %v243, %v536
      %v545 = vadd.f32 %v525, %v537
      %v546 = vadd.f32 %v526, %v538
      %v547 = vadd.f32 %v527, %v539
      %v548 = vadd.f32 %v528, %v540
      %v549 = vadd.f32 %v529, %v541
      %v550 = vadd.f32 %v530, %v542
      %v551 = vadd.f32 %v531, %v543
      %v552 = vadd.f32 %v532, %v544
      %v553 = vlaneseq
      %v554 = vshrl.u32 %v553, 7
      %v555 = vsub.s32 7, %v554
      %v556 = vrot.slane %v217, %v555
      %v557 = vmul.f32 %v225, %v556
      %v558 = vmul.f32 %v228, %v556
      %v559 = vmul.f32 %v231, %v556
      %v560 = vmul.f32 %v234, %v556
      %v561 = vmul.f32 %v237, %v556
      %v562 = vmul.f32 %v240, %v556
      %v563 = vmul.f32 %v243, %v556
      %v564 = vmul.f32 %v246, %v556
      %v565 = vadd.f32 %v545, %v557
      %v566 = vadd.f32 %v546, %v558
      %v567 = vadd.f32 %v547, %v559
      %v568 = vadd.f32 %v548, %v560
      %v569 = vadd.f32 %v549, %v561
      %v570 = vadd.f32 %v550, %v562
      %v571 = vadd.f32 %v551, %v563
      %v572 = vadd.f32 %v552, %v564
      %v573 = vlaneseq
      %v574 = vshrl.u32 %v573, 7
      %v575 = vsub.s32 4, %v574
      %v576 = vrot.slane %v218, %v575
      %v577 = vmul.f32 %v228, %v576
      %v578 = vmul.f32 %v231, %v576
      %v579 = vmul.f32 %v234, %v576
      %v580 = vmul.f32 %v237, %v576
      %v581 = vmul.f32 %v240, %v576
      %v582 = vmul.f32 %v243, %v576
      %v583 = vmul.f32 %v246, %v576
      %v584 = vmul.f32 %v249, %v576
      %v585 = vadd.f32 %v565, %v577
      %v586 = vadd.f32 %v566, %v578
      %v587 = vadd.f32 %v567, %v579
      %v588 = vadd.f32 %v568, %v580
      %v589 = vadd.f32 %v569, %v581
      %v590 = vadd.f32 %v570, %v582
      %v591 = vadd.f32 %v571, %v583
      %v592 = vadd.f32 %v572, %v584
      %v593 = vlaneseq
      %v594 = vshrl.u32 %v593, 7
      %v595 = vsub.s32 1, %v594
      %v596 = vrot.slane %v219, %v595
      %v597 = vmul.f32 %v231, %v596
      %v598 = vmul.f32 %v234, %v596
      %v599 = vmul.f32 %v237, %v596
      %v600 = vmul.f32 %v240, %v596
      %v601 = vmul.f32 %v243, %v596
      %v602 = vmul.f32 %v246, %v596
      %v603 = vmul.f32 %v249, %v596
      %v604 = vmul.f32 %v252, %v596
      %v605 = vadd.f32 %v585, %v597
      %v606 = vadd.f32 %v586, %v598
      %v607 = vadd.f32 %v587, %v599
      %v608 = vadd.f32 %v588, %v600
      %v609 = vadd.f32 %v589, %v601
      %v610 = vadd.f32 %v590, %v602
      %v611 = vadd.f32 %v591, %v603
      %v612 = vadd.f32 %v592, %v604
      %v613 = vlaneseq
      %v614 = vshrl.u32 %v613, 7
      %v615 = vsub.s32 6, %v614
      %v616 = vrot.slane %v219, %v615
      %v617 = vmul.f32 %v234, %v616
      %v618 = vmul.f32 %v237, %v616
      %v619 = vmul.f32 %v240, %v616
      %v620 = vmul.f32 %v243, %v616
      %v621 = vmul.f32 %v246, %v616
      %v622 = vmul.f32 %v249, %v616
      %v623 = vmul.f32 %v252, %v616
      %v624 = vmul.f32 %v255, %v616
      %v625 = vadd.f32 %v605, %v617
      %v626 = vadd.f32 %v606, %v618
      %v627 = vadd.f32 %v607, %v619
      %v628 = vadd.f32 %v608, %v620
      %v629 = vadd.f32 %v609, %v621
      %v630 = vadd.f32 %v610, %v622
      %v631 = vadd.f32 %v611, %v623
      %v632 = vadd.f32 %v612, %v624
      %v633 = vrot.slane %v222, 1
      %v634 = vrot.slane %v225, 1
      %v635 = vrot.slane %v228, 1
      %v636 = vrot.slane %v231, 1
      %v637 = vrot.slane %v234, 1
      %v638 = vrot.slane %v237, 1
      %v639 = vrot.slane %v240, 1
      %v640 = vrot.slane %v243, 1
      %v641 = vrot.slane %v246, 1
      %v642 = vrot.slane %v249, 1
      %v643 = vrot.slane %v252, 1
      %v644 = vrot.slane %v255, 1
      %v645 = vrot.slane %v223, 1
      %v646 = vrot.slane %v226, 1
      %v647 = vrot.slane %v229, 1
      %v648 = vrot.slane %v232, 1
      %v649 = vrot.slane %v235, 1
      %v650 = vrot.slane %v238, 1
      %v651 = vrot.slane %v241, 1
      %v652 = vrot.slane %v244, 1
      %v653 = vrot.slane %v247, 1
      %v654 = vrot.slane %v250, 1
      %v655 = vrot.slane %v253, 1
      %v656 = vrot.slane %v256, 1
      %vm657 = vcmp.lt.s32.totalorder %v282, 7
      %v658 = vsel %vm657, %v633, %v645
      %v659 = vsel %vm657, %v634, %v646
      %v660 = vsel %vm657, %v635, %v647
      %v661 = vsel %vm657, %v636, %v648
      %v662 = vsel %vm657, %v637, %v649
      %v663 = vsel %vm657, %v638, %v650
      %v664 = vsel %vm657, %v639, %v651
      %v665 = vsel %vm657, %v640, %v652
      %v666 = vsel %vm657, %v641, %v653
      %v667 = vsel %vm657, %v642, %v654
      %v668 = vsel %vm657, %v643, %v655
      %v669 = vsel %vm657, %v644, %v656
      %v670 = vlaneseq
      %v671 = vshrl.u32 %v670, 7
      %v672 = vsub.s32 3, %v671
      %v673 = vrot.slane %v217, %v672
      %v674 = vmul.f32 %v658, %v673
      %v675 = vmul.f32 %v659, %v673
      %v676 = vmul.f32 %v660, %v673
      %v677 = vmul.f32 %v661, %v673
      %v678 = vmul.f32 %v662, %v673
      %v679 = vmul.f32 %v663, %v673
      %v680 = vmul.f32 %v664, %v673
      %v681 = vmul.f32 %v665, %v673
      %v682 = vadd.f32 %v625, %v674
      %v683 = vadd.f32 %v626, %v675
      %v684 = vadd.f32 %v627, %v676
      %v685 = vadd.f32 %v628, %v677
      %v686 = vadd.f32 %v629, %v678
      %v687 = vadd.f32 %v630, %v679
      %v688 = vadd.f32 %v631, %v680
      %v689 = vadd.f32 %v632, %v681
      %v690 = vlaneseq
      %v691 = vshrl.u32 %v690, 7
      %v692 = vsub.s32 0, %v691
      %v693 = vrot.slane %v218, %v692
      %v694 = vmul.f32 %v659, %v693
      %v695 = vmul.f32 %v660, %v693
      %v696 = vmul.f32 %v661, %v693
      %v697 = vmul.f32 %v662, %v693
      %v698 = vmul.f32 %v663, %v693
      %v699 = vmul.f32 %v664, %v693
      %v700 = vmul.f32 %v665, %v693
      %v701 = vmul.f32 %v666, %v693
      %v702 = vadd.f32 %v682, %v694
      %v703 = vadd.f32 %v683, %v695
      %v704 = vadd.f32 %v684, %v696
      %v705 = vadd.f32 %v685, %v697
      %v706 = vadd.f32 %v686, %v698
      %v707 = vadd.f32 %v687, %v699
      %v708 = vadd.f32 %v688, %v700
      %v709 = vadd.f32 %v689, %v701
      %v710 = vlaneseq
      %v711 = vshrl.u32 %v710, 7
      %v712 = vsub.s32 5, %v711
      %v713 = vrot.slane %v218, %v712
      %v714 = vmul.f32 %v660, %v713
      %v715 = vmul.f32 %v661, %v713
      %v716 = vmul.f32 %v662, %v713
      %v717 = vmul.f32 %v663, %v713
      %v718 = vmul.f32 %v664, %v713
      %v719 = vmul.f32 %v665, %v713
      %v720 = vmul.f32 %v666, %v713
      %v721 = vmul.f32 %v667, %v713
      %v722 = vadd.f32 %v702, %v714
      %v723 = vadd.f32 %v703, %v715
      %v724 = vadd.f32 %v704, %v716
      %v725 = vadd.f32 %v705, %v717
      %v726 = vadd.f32 %v706, %v718
      %v727 = vadd.f32 %v707, %v719
      %v728 = vadd.f32 %v708, %v720
      %v729 = vadd.f32 %v709, %v721
      %v730 = vlaneseq
      %v731 = vshrl.u32 %v730, 7
      %v732 = vsub.s32 2, %v731
      %v733 = vrot.slane %v219, %v732
      %v734 = vmul.f32 %v661, %v733
      %v735 = vmul.f32 %v662, %v733
      %v736 = vmul.f32 %v663, %v733
      %v737 = vmul.f32 %v664, %v733
      %v738 = vmul.f32 %v665, %v733
      %v739 = vmul.f32 %v666, %v733
      %v740 = vmul.f32 %v667, %v733
      %v741 = vmul.f32 %v668, %v733
      %v742 = vadd.f32 %v722, %v734
      %v743 = vadd.f32 %v723, %v735
      %v744 = vadd.f32 %v724, %v736
      %v745 = vadd.f32 %v725, %v737
      %v746 = vadd.f32 %v726, %v738
      %v747 = vadd.f32 %v727, %v739
      %v748 = vadd.f32 %v728, %v740
      %v749 = vadd.f32 %v729, %v741
      %v750 = vlaneseq
      %v751 = vshrl.u32 %v750, 7
      %v752 = vsub.s32 7, %v751
      %v753 = vrot.slane %v219, %v752
      %v754 = vmul.f32 %v662, %v753
      %v755 = vmul.f32 %v663, %v753
      %v756 = vmul.f32 %v664, %v753
      %v757 = vmul.f32 %v665, %v753
      %v758 = vmul.f32 %v666, %v753
      %v759 = vmul.f32 %v667, %v753
      %v760 = vmul.f32 %v668, %v753
      %v761 = vmul.f32 %v669, %v753
      %v762 = vadd.f32 %v742, %v754
      %v763 = vadd.f32 %v743, %v755
      %v764 = vadd.f32 %v744, %v756
      %v765 = vadd.f32 %v745, %v757
      %v766 = vadd.f32 %v746, %v758
      %v767 = vadd.f32 %v747, %v759
      %v768 = vadd.f32 %v748, %v760
      %v769 = vadd.f32 %v749, %v761
      %v770 = vrot.slane %v222, 2
      %v771 = vrot.slane %v225, 2
      %v772 = vrot.slane %v228, 2
      %v773 = vrot.slane %v231, 2
      %v774 = vrot.slane %v234, 2
      %v775 = vrot.slane %v237, 2
      %v776 = vrot.slane %v240, 2
      %v777 = vrot.slane %v243, 2
      %v778 = vrot.slane %v246, 2
      %v779 = vrot.slane %v249, 2
      %v780 = vrot.slane %v252, 2
      %v781 = vrot.slane %v255, 2
      %v782 = vrot.slane %v223, 2
      %v783 = vrot.slane %v226, 2
      %v784 = vrot.slane %v229, 2
      %v785 = vrot.slane %v232, 2
      %v786 = vrot.slane %v235, 2
      %v787 = vrot.slane %v238, 2
      %v788 = vrot.slane %v241, 2
      %v789 = vrot.slane %v244, 2
      %v790 = vrot.slane %v247, 2
      %v791 = vrot.slane %v250, 2
      %v792 = vrot.slane %v253, 2
      %v793 = vrot.slane %v256, 2
      %vm794 = vcmp.lt.s32.totalorder %v282, 6
      %v795 = vsel %vm794, %v770, %v782
      %v796 = vsel %vm794, %v771, %v783
      %v797 = vsel %vm794, %v772, %v784
      %v798 = vsel %vm794, %v773, %v785
      %v799 = vsel %vm794, %v774, %v786
      %v800 = vsel %vm794, %v775, %v787
      %v801 = vsel %vm794, %v776, %v788
      %v802 = vsel %vm794, %v777, %v789
      %v803 = vsel %vm794, %v778, %v790
      %v804 = vsel %vm794, %v779, %v791
      %v805 = vsel %vm794, %v780, %v792
      %v806 = vsel %vm794, %v781, %v793
      %v807 = vlaneseq
      %v808 = vshrl.u32 %v807, 7
      %v809 = vsub.s32 4, %v808
      %v810 = vrot.slane %v217, %v809
      %v811 = vmul.f32 %v795, %v810
      %v812 = vmul.f32 %v796, %v810
      %v813 = vmul.f32 %v797, %v810
      %v814 = vmul.f32 %v798, %v810
      %v815 = vmul.f32 %v799, %v810
      %v816 = vmul.f32 %v800, %v810
      %v817 = vmul.f32 %v801, %v810
      %v818 = vmul.f32 %v802, %v810
      %v819 = vadd.f32 %v762, %v811
      %v820 = vadd.f32 %v763, %v812
      %v821 = vadd.f32 %v764, %v813
      %v822 = vadd.f32 %v765, %v814
      %v823 = vadd.f32 %v766, %v815
      %v824 = vadd.f32 %v767, %v816
      %v825 = vadd.f32 %v768, %v817
      %v826 = vadd.f32 %v769, %v818
      %v827 = vlaneseq
      %v828 = vshrl.u32 %v827, 7
      %v829 = vsub.s32 1, %v828
      %v830 = vrot.slane %v218, %v829
      %v831 = vmul.f32 %v796, %v830
      %v832 = vmul.f32 %v797, %v830
      %v833 = vmul.f32 %v798, %v830
      %v834 = vmul.f32 %v799, %v830
      %v835 = vmul.f32 %v800, %v830
      %v836 = vmul.f32 %v801, %v830
      %v837 = vmul.f32 %v802, %v830
      %v838 = vmul.f32 %v803, %v830
      %v839 = vadd.f32 %v819, %v831
      %v840 = vadd.f32 %v820, %v832
      %v841 = vadd.f32 %v821, %v833
      %v842 = vadd.f32 %v822, %v834
      %v843 = vadd.f32 %v823, %v835
      %v844 = vadd.f32 %v824, %v836
      %v845 = vadd.f32 %v825, %v837
      %v846 = vadd.f32 %v826, %v838
      %v847 = vlaneseq
      %v848 = vshrl.u32 %v847, 7
      %v849 = vsub.s32 6, %v848
      %v850 = vrot.slane %v218, %v849
      %v851 = vmul.f32 %v797, %v850
      %v852 = vmul.f32 %v798, %v850
      %v853 = vmul.f32 %v799, %v850
      %v854 = vmul.f32 %v800, %v850
      %v855 = vmul.f32 %v801, %v850
      %v856 = vmul.f32 %v802, %v850
      %v857 = vmul.f32 %v803, %v850
      %v858 = vmul.f32 %v804, %v850
      %v859 = vadd.f32 %v839, %v851
      %v860 = vadd.f32 %v840, %v852
      %v861 = vadd.f32 %v841, %v853
      %v862 = vadd.f32 %v842, %v854
      %v863 = vadd.f32 %v843, %v855
      %v864 = vadd.f32 %v844, %v856
      %v865 = vadd.f32 %v845, %v857
      %v866 = vadd.f32 %v846, %v858
      %v867 = vlaneseq
      %v868 = vshrl.u32 %v867, 7
      %v869 = vsub.s32 3, %v868
      %v870 = vrot.slane %v219, %v869
      %v871 = vmul.f32 %v798, %v870
      %v872 = vmul.f32 %v799, %v870
      %v873 = vmul.f32 %v800, %v870
      %v874 = vmul.f32 %v801, %v870
      %v875 = vmul.f32 %v802, %v870
      %v876 = vmul.f32 %v803, %v870
      %v877 = vmul.f32 %v804, %v870
      %v878 = vmul.f32 %v805, %v870
      %v879 = vadd.f32 %v859, %v871
      %v880 = vadd.f32 %v860, %v872
      %v881 = vadd.f32 %v861, %v873
      %v882 = vadd.f32 %v862, %v874
      %v883 = vadd.f32 %v863, %v875
      %v884 = vadd.f32 %v864, %v876
      %v885 = vadd.f32 %v865, %v877
      %v886 = vadd.f32 %v866, %v878
      %v887 = vlaneseq
      %v888 = vshrl.u32 %v887, 7
      %v889 = vsub.s32 0, %v888
      %v890 = vrot.slane %v220, %v889
      %v891 = vmul.f32 %v799, %v890
      %v892 = vmul.f32 %v800, %v890
      %v893 = vmul.f32 %v801, %v890
      %v894 = vmul.f32 %v802, %v890
      %v895 = vmul.f32 %v803, %v890
      %v896 = vmul.f32 %v804, %v890
      %v897 = vmul.f32 %v805, %v890
      %v898 = vmul.f32 %v806, %v890
      %v899 = vadd.f32 %v879, %v891
      %v900 = vadd.f32 %v880, %v892
      %v901 = vadd.f32 %v881, %v893
      %v902 = vadd.f32 %v882, %v894
      %v903 = vadd.f32 %v883, %v895
      %v904 = vadd.f32 %v884, %v896
      %v905 = vadd.f32 %v885, %v897
      %v906 = vadd.f32 %v886, %v898
      %v907 = vld [vmem:[%s2] sm:$0x1]
      %v909 = vlaneseq
      %v910 = vshrl.u32 %v909, 7
      %v911 = vsub.s32 0, %v910
      %v912 = vrot.slane %v907, %v911
      %v914 = vadd.f32 %v899, %v912
      %v915 = vadd.f32 %v900, %v912
      %v916 = vadd.f32 %v901, %v912
      %v917 = vadd.f32 %v902, %v912
      %v918 = vadd.f32 %v903, %v912
      %v919 = vadd.f32 %v904, %v912
      %v920 = vadd.f32 %v905, %v912
      %v921 = vadd.f32 %v906, %v912
      %v922 = vpack.c.bf16 %v914, %v914
      %v923 = vpack.c.bf16 %v915, %v915
      %v924 = vpack.c.bf16 %v916, %v916
      %v925 = vpack.c.bf16 %v917, %v917
      %v926 = vpack.c.bf16 %v918, %v918
      %v927 = vpack.c.bf16 %v919, %v919
      %v928 = vpack.c.bf16 %v920, %v920
      %v929 = vpack.c.bf16 %v921, %v921
      %930 = vst [vmem:[%s170] sm:$0xf] %v922
      %931 = vst [vmem:[%s170 + $0x4] sm:$0xf] %v923
      %932 = vst [vmem:[%s170 + $0x8] sm:$0xf] %v924
      %933 = vst [vmem:[%s170 + $0xc] sm:$0xf] %v925
      %934 = vst [vmem:[%s170 + $0x10] sm:$0xf] %v926
      %935 = vst [vmem:[%s170 + $0x14] sm:$0xf] %v927
      %936 = vst [vmem:[%s170 + $0x18] sm:$0xf] %v928
      %937 = vst [vmem:[%s170 + $0x1c] sm:$0xf] %v929
      %p938 = scmp.lt.s32.totalorder %s14, 1
      %s939 = scalar_select %p938, %s14, 1
      %s940 = smul.addr %s939, 8
      %s941 = smul.addr %s940, 4
      %s942 = scalar_lea.vmem %s3, %s941
      // Predicated region
      $region33: #{mcam_forward.4} parent=31 // pred_check
        %p943 = pneg %p100
      $region34: #{mcam_forward.4} parent=31 // pred_check_branch
        %945 = sbr.rel (%p943) target = $region36
      $region35: #{mcam_forward.4} parent=31 // pred_region
        _
      $region36: #{mcam_forward.4} parent=31 // pred_fallthru
        _
    $region32: #{mcam_forward.4} parent=5 // pred_fallthru
      _
    %p946 = scmp.le.s32.totalorder 2, %s9
    // Predicated region
    $region37: #{mcam_forward.4} parent=5 // pred_check
      %p947 = pneg %p946
    $region38: #{mcam_forward.4} parent=5 // pred_check_branch
      %949 = sbr.rel (%p947) target = $region40
    $region39: #{mcam_forward.4} parent=5 // pred_region
      %s950 = ssub.s32 %s9, 2
      // Predicated region
      $region41: #{mcam_forward.4} parent=39 // pred_check
        %p951 = pneg %p106
      $region42: #{mcam_forward.4} parent=39 // pred_check_branch
        %953 = sbr.rel (%p951) target = $region44
      $region43: #{mcam_forward.4} parent=39 // pred_region
        %p954 = scmp.lt.s32.totalorder %s15, 1
        %s955 = scalar_select %p954, %s15, 1
        %s956 = smul.addr %s955, 8
        %s957 = smul.addr %s956, 4
        %s958 = scalar_lea.vmem %s3, %s957
      $region44: #{mcam_forward.4} parent=39 // pred_fallthru
        _
    $region40: #{mcam_forward.4} parent=5 // pred_fallthru
      _
  $region6: #{mcam_forward.4} parent=0 // loop_footer
    %s13 = sadd.s32 1, %s9
  $region7: #{mcam_forward.4} parent=0 // loop_footer_branch
    %8 = sbr.rel target = $region3
  $region8: #{mcam_forward.4} parent=0 // loop_exit
    _

</llo_original>
